<compile_context>
chip_gen: v5e
topology: v5e:2x2
jax: 0.10.0
libtpu: 0.0.40
codegen_flags: <defaults>
</compile_context>

<pallas_src>
import jax
import jax.numpy as jnp
from jax import lax
from jax.experimental import pallas as pl
from jax.experimental.pallas import tpu as pltpu


def _make_fused_kernel(H, W):
    """Fused (replpad -> conv3x3 -> relu) x 2 kernel for one image."""
    HW = H * W

    def _roll(x, s):
        # Normalize to a non-negative static rotation amount.
        return pltpu.roll(x, s % HW, axis=1)

    def _conv3x3_relu(f, col, w_ref, b_ref):
        """f: (C, H*W) plane (row-major).  Returns (Cout, H*W), f32."""
        C = f.shape[0]
        Cout = w_ref.shape[1]

        # Hoisted masks (JAX does not CSE broadcast_in_dim -> build once).
        p = lax.broadcasted_iota(jnp.int32, (C, HW), 1)      # flat index h*W+w
        colc = jnp.broadcast_to(col, (C, HW))                # column index w
        not_first_row = p >= W
        not_last_row = p < (H - 1) * W
        not_first_col = colc >= 1
        not_last_col = colc <= W - 2

        acc = jnp.zeros((Cout, HW), jnp.float32)
        for dh in (-1, 0, 1):
            # Row shift with replication clamp at the top/bottom edge.
            if dh == -1:
                fr = jnp.where(not_first_row, _roll(f, W), f)
            elif dh == 1:
                fr = jnp.where(not_last_row, _roll(f, -W), f)
            else:
                fr = f
            for dw in (-1, 0, 1):
                # Column shift with replication clamp at the left/right edge.
                if dw == -1:
                    g = jnp.where(not_first_col, _roll(fr, 1), fr)
                elif dw == 1:
                    g = jnp.where(not_last_col, _roll(fr, -1), fr)
                else:
                    g = fr
                t = (dh + 1) * 3 + (dw + 1)                  # tap = kh*3+kw
                # Whole-plane MXU matmul: (Cout,C) @ (C, H*W), lane-dense N.
                acc = acc + jnp.dot(w_ref[t], g,
                                    preferred_element_type=jnp.float32)
        return jnp.maximum(acc + b_ref[...], 0.0)            # bias + ReLU

    def kernel(col_ref, x_ref, w1_ref, b1_ref, w2_ref, b2_ref, o_ref):
        col = col_ref[...]                                   # (1, H*W) int32
        x = x_ref[...].astype(jnp.float32)                   # (Cin, H*W)
        h1 = _conv3x3_relu(x, col, w1_ref, b1_ref)           # stays on-chip
        h2 = _conv3x3_relu(h1, col, w2_ref, b2_ref)
        o_ref[...] = h2.astype(o_ref.dtype)                  # (Cout, H*W)

    return kernel


def conv_block_init(x_nchw, params):
    """Full _ConvBlockInit forward.  Input/output are NCHW like PyTorch."""
    N, Cin, H, W = x_nchw.shape
    Cout = params["w1"].shape[-1]
    HW = H * W

    # HWIO (3,3,Cin,Cout) -> (9, Cout, Cin), tap index = kh*3+kw.
    w1 = jnp.transpose(params["w1"], (0, 1, 3, 2)).reshape(9, Cout, Cin)
    w2 = jnp.transpose(params["w2"], (0, 1, 3, 2)).reshape(9, Cout, Cout)
    b1 = params["b1"].reshape(Cout, 1)
    b2 = params["b2"].reshape(Cout, 1)

    x_flat = x_nchw.reshape(N, Cin, HW)                      # free reshape
    col = (jnp.arange(HW, dtype=jnp.int32) % W).reshape(1, HW)

    kernel = _make_fused_kernel(H, W)
    out = pl.pallas_call(
        kernel,
        out_shape=jax.ShapeDtypeStruct((N, Cout, HW), x_nchw.dtype),
        grid_spec=pltpu.PrefetchScalarGridSpec(
            num_scalar_prefetch=0,
            grid=(N,),
            in_specs=[
                pl.BlockSpec((1, HW), lambda n: (0, 0)),            # col idx
                pl.BlockSpec((None, Cin, HW), lambda n: (n, 0, 0)),  # image
                pl.BlockSpec((9, Cout, Cin), lambda n: (0, 0, 0)),   # w1 taps
                pl.BlockSpec((Cout, 1), lambda n: (0, 0)),           # b1
                pl.BlockSpec((9, Cout, Cout), lambda n: (0, 0, 0)),  # w2 taps
                pl.BlockSpec((Cout, 1), lambda n: (0, 0)),           # b2
            ],
            out_specs=pl.BlockSpec((None, Cout, HW), lambda n: (n, 0, 0)),
        ),
        compiler_params=pltpu.CompilerParams(
            dimension_semantics=("parallel",),
            vmem_limit_bytes=32 * 1024 * 1024,
        ),
    )(col, x_flat, w1, b1, w2, b2)
    # TODO(synk): for production-scale images (e.g. 512x512, Cout>=64) add an
    # H-strip grid axis with a 2-row halo (strip-local replication padding) so
    # the fused block fits v7x's 64 MiB VMEM and both TCs stay busy when N==1.
    return out.reshape(N, Cout, H, W)                        # free reshape


def init_params(key, in_channels, out_channels):
    """Deterministic PyTorch-style uniform init (bound = 1/sqrt(fan_in))."""
    k1, k2, k3, k4 = jax.random.split(key, 4)
    bnd1 = 1.0 / jnp.sqrt(in_channels * 9)
    bnd2 = 1.0 / jnp.sqrt(out_channels * 9)
    return {
        # HWIO weight layout (matches the lax.conv reference).
        "w1": jax.random.uniform(k1, (3, 3, in_channels, out_channels),
                                 jnp.float32, -bnd1, bnd1),
        "b1": jax.random.uniform(k2, (out_channels,), jnp.float32, -bnd1, bnd1),
        "w2": jax.random.uniform(k3, (3, 3, out_channels, out_channels),
                                 jnp.float32, -bnd2, bnd2),
        "b2": jax.random.uniform(k4, (out_channels,), jnp.float32, -bnd2, bnd2),
    }


def _reference(x_nchw, params):
    """Pure-JAX reference (lax conv + edge pad) for correctness checking."""
    def layer(x_nhwc, w, b):
        xp = jnp.pad(x_nhwc, ((0, 0), (1, 1), (1, 1), (0, 0)), mode="edge")
        y = lax.conv_general_dilated(
            xp, w, window_strides=(1, 1), padding="VALID",
            dimension_numbers=("NHWC", "HWIO", "NHWC"))
        return jnp.maximum(y + b, 0.0)

    x = jnp.transpose(x_nchw, (0, 2, 3, 1))
    x = layer(x, params["w1"], params["b1"])
    x = layer(x, params["w2"], params["b2"])
    return jnp.transpose(x, (0, 3, 1, 2))


if __name__ == "__main__":
    key = jax.random.PRNGKey(0)
    kx, kp = jax.random.split(key)

    N, Cin, Cout, H, W = 2, 4, 8, 16, 16
    x = jax.random.normal(kx, (N, Cin, H, W), jnp.float32)   # NCHW like PyTorch
    params = init_params(kp, Cin, Cout)

    fwd = jax.jit(conv_block_init)
    out = jax.block_until_ready(fwd(x, params))

    ref = jax.block_until_ready(_reference(x, params))
    assert out.shape == (N, Cout, H, W)
    assert jnp.allclose(out, ref, atol=1e-4, rtol=1e-4), \
        float(jnp.max(jnp.abs(out - ref)))

    print("KERNEL_OK")
</pallas_src>

<mosaic_0001>
module attributes {stable_mosaic.version = 11 : i64} {
  func.func @kernel(%arg0: i32, %arg1: memref<1x256xi32, #tpu.memory_space<vmem>>, %arg2: memref<1x4x256xf32, #tpu.memory_space<vmem>>, %arg3: memref<9x8x4xf32, #tpu.memory_space<vmem>>, %arg4: memref<8x1xf32, #tpu.memory_space<vmem>>, %arg5: memref<9x8x8xf32, #tpu.memory_space<vmem>>, %arg6: memref<8x1xf32, #tpu.memory_space<vmem>>, %arg7: memref<1x8x256xf32, #tpu.memory_space<vmem>>) attributes {dimension_semantics = [#tpu.dimension_semantics<parallel>], iteration_bounds = array<i64: 2>, scalar_prefetch = 0 : i64, scratch_operands = 0 : i64, tpu.core_type = #tpu.core_type<tc>, window_params = [{pipeline_mode = #tpu.pipeline_mode<synchronous>, transform_indices = @transform_0, window_bounds = array<i64: 1, 256>}, {transform_indices = @transform_1, window_bounds = array<i64: 1, 4, 256>}, {pipeline_mode = #tpu.pipeline_mode<synchronous>, transform_indices = @transform_2, window_bounds = array<i64: 9, 8, 4>}, {pipeline_mode = #tpu.pipeline_mode<synchronous>, transform_indices = @transform_3, window_bounds = array<i64: 8, 1>}, {pipeline_mode = #tpu.pipeline_mode<synchronous>, transform_indices = @transform_4, window_bounds = array<i64: 9, 8, 8>}, {pipeline_mode = #tpu.pipeline_mode<synchronous>, transform_indices = @transform_5, window_bounds = array<i64: 8, 1>}, {transform_indices = @transform_6, window_bounds = array<i64: 1, 8, 256>}]} {
    %c0 = arith.constant 0 : index
    %c0_0 = arith.constant 0 : index
    %0 = vector.load %arg1[%c0, %c0_0] : memref<1x256xi32, #tpu.memory_space<vmem>>, vector<1x256xi32>
    %c0_1 = arith.constant 0 : index
    %c0_2 = arith.constant 0 : index
    %c0_3 = arith.constant 0 : index
    %1 = vector.load %arg2[%c0_1, %c0_2, %c0_3] : memref<1x4x256xf32, #tpu.memory_space<vmem>>, vector<1x4x256xf32>
    %2 = vector.shape_cast %1 : vector<1x4x256xf32> to vector<4x256xf32>
    %3 = tpu.iota {dimensions = array<i32: 1>} : vector<4x256xi32>
    %4 = vector.shape_cast %0 : vector<1x256xi32> to vector<1x256xi32>
    %5 = vector.broadcast %4 : vector<1x256xi32> to vector<4x256xi32>
    %c16_i32 = arith.constant 16 : i32
    %6 = vector.broadcast %c16_i32 : i32 to vector<4x256xi32>
    %7 = arith.cmpi sge, %3, %6 : vector<4x256xi32>
    %c240_i32 = arith.constant 240 : i32
    %8 = vector.broadcast %c240_i32 : i32 to vector<4x256xi32>
    %9 = arith.cmpi slt, %3, %8 : vector<4x256xi32>
    %c1_i32 = arith.constant 1 : i32
    %10 = vector.broadcast %c1_i32 : i32 to vector<4x256xi32>
    %11 = arith.cmpi sge, %5, %10 : vector<4x256xi32>
    %c14_i32 = arith.constant 14 : i32
    %12 = vector.broadcast %c14_i32 : i32 to vector<4x256xi32>
    %13 = arith.cmpi sle, %5, %12 : vector<4x256xi32>
    %cst = arith.constant 0.000000e+00 : f32
    %14 = vector.broadcast %cst : f32 to vector<8x256xf32>
    %c16_i32_4 = arith.constant 16 : i32
    %15 = tpu.dynamic_rotate %2 by %c16_i32_4 dim 1 : vector<4x256xf32>, i32 -> vector<4x256xf32>
    %16 = arith.select %7, %15, %2 : vector<4x256xi1>, vector<4x256xf32>
    %c1_i32_5 = arith.constant 1 : i32
    %17 = tpu.dynamic_rotate %16 by %c1_i32_5 dim 1 : vector<4x256xf32>, i32 -> vector<4x256xf32>
    %18 = arith.select %11, %17, %16 : vector<4x256xi1>, vector<4x256xf32>
    %c0_6 = arith.constant 0 : index
    %c0_7 = arith.constant 0 : index
    %c0_8 = arith.constant 0 : index
    %19 = vector.load %arg3[%c0_6, %c0_7, %c0_8] : memref<9x8x4xf32, #tpu.memory_space<vmem>>, vector<1x8x4xf32>
    %20 = vector.shape_cast %19 : vector<1x8x4xf32> to vector<8x4xf32>
    %cst_9 = arith.constant dense<0.000000e+00> : vector<8x256xf32>
    %21 = tpu.matmul %20, %18, %cst_9 {dimension_numbers = #tpu.dot_dimension_numbers<[1], [0], [0], [1], [0, 0, 1, 1], [], []>} : vector<8x4xf32>, vector<4x256xf32>, vector<8x256xf32> -> vector<8x256xf32>
    %22 = arith.addf %14, %21 : vector<8x256xf32>
    %c1 = arith.constant 1 : index
    %c0_10 = arith.constant 0 : index
    %c0_11 = arith.constant 0 : index
    %23 = vector.load %arg3[%c1, %c0_10, %c0_11] : memref<9x8x4xf32, #tpu.memory_space<vmem>>, vector<1x8x4xf32>
    %24 = vector.shape_cast %23 : vector<1x8x4xf32> to vector<8x4xf32>
    %cst_12 = arith.constant dense<0.000000e+00> : vector<8x256xf32>
    %25 = tpu.matmul %24, %16, %cst_12 {dimension_numbers = #tpu.dot_dimension_numbers<[1], [0], [0], [1], [0, 0, 1, 1], [], []>} : vector<8x4xf32>, vector<4x256xf32>, vector<8x256xf32> -> vector<8x256xf32>
    %26 = arith.addf %22, %25 : vector<8x256xf32>
    %c255_i32 = arith.constant 255 : i32
    %27 = tpu.dynamic_rotate %16 by %c255_i32 dim 1 : vector<4x256xf32>, i32 -> vector<4x256xf32>
    %28 = arith.select %13, %27, %16 : vector<4x256xi1>, vector<4x256xf32>
    %c2 = arith.constant 2 : index
    %c0_13 = arith.constant 0 : index
    %c0_14 = arith.constant 0 : index
    %29 = vector.load %arg3[%c2, %c0_13, %c0_14] : memref<9x8x4xf32, #tpu.memory_space<vmem>>, vector<1x8x4xf32>
    %30 = vector.shape_cast %29 : vector<1x8x4xf32> to vector<8x4xf32>
    %cst_15 = arith.constant dense<0.000000e+00> : vector<8x256xf32>
    %31 = tpu.matmul %30, %28, %cst_15 {dimension_numbers = #tpu.dot_dimension_numbers<[1], [0], [0], [1], [0, 0, 1, 1], [], []>} : vector<8x4xf32>, vector<4x256xf32>, vector<8x256xf32> -> vector<8x256xf32>
    %32 = arith.addf %26, %31 : vector<8x256xf32>
    %c1_i32_16 = arith.constant 1 : i32
    %33 = tpu.dynamic_rotate %2 by %c1_i32_16 dim 1 : vector<4x256xf32>, i32 -> vector<4x256xf32>
    %34 = arith.select %11, %33, %2 : vector<4x256xi1>, vector<4x256xf32>
    %c3 = arith.constant 3 : index
    %c0_17 = arith.constant 0 : index
    %c0_18 = arith.constant 0 : index
    %35 = vector.load %arg3[%c3, %c0_17, %c0_18] : memref<9x8x4xf32, #tpu.memory_space<vmem>>, vector<1x8x4xf32>
    %36 = vector.shape_cast %35 : vector<1x8x4xf32> to vector<8x4xf32>
    %cst_19 = arith.constant dense<0.000000e+00> : vector<8x256xf32>
    %37 = tpu.matmul %36, %34, %cst_19 {dimension_numbers = #tpu.dot_dimension_numbers<[1], [0], [0], [1], [0, 0, 1, 1], [], []>} : vector<8x4xf32>, vector<4x256xf32>, vector<8x256xf32> -> vector<8x256xf32>
    %38 = arith.addf %32, %37 : vector<8x256xf32>
    %c4 = arith.constant 4 : index
    %c0_20 = arith.constant 0 : index
    %c0_21 = arith.constant 0 : index
    %39 = vector.load %arg3[%c4, %c0_20, %c0_21] : memref<9x8x4xf32, #tpu.memory_space<vmem>>, vector<1x8x4xf32>
    %40 = vector.shape_cast %39 : vector<1x8x4xf32> to vector<8x4xf32>
    %cst_22 = arith.constant dense<0.000000e+00> : vector<8x256xf32>
    %41 = tpu.matmul %40, %2, %cst_22 {dimension_numbers = #tpu.dot_dimension_numbers<[1], [0], [0], [1], [0, 0, 1, 1], [], []>} : vector<8x4xf32>, vector<4x256xf32>, vector<8x256xf32> -> vector<8x256xf32>
    %42 = arith.addf %38, %41 : vector<8x256xf32>
    %c255_i32_23 = arith.constant 255 : i32
    %43 = tpu.dynamic_rotate %2 by %c255_i32_23 dim 1 : vector<4x256xf32>, i32 -> vector<4x256xf32>
    %44 = arith.select %13, %43, %2 : vector<4x256xi1>, vector<4x256xf32>
    %c5 = arith.constant 5 : index
    %c0_24 = arith.constant 0 : index
    %c0_25 = arith.constant 0 : index
    %45 = vector.load %arg3[%c5, %c0_24, %c0_25] : memref<9x8x4xf32, #tpu.memory_space<vmem>>, vector<1x8x4xf32>
    %46 = vector.shape_cast %45 : vector<1x8x4xf32> to vector<8x4xf32>
    %cst_26 = arith.constant dense<0.000000e+00> : vector<8x256xf32>
    %47 = tpu.matmul %46, %44, %cst_26 {dimension_numbers = #tpu.dot_dimension_numbers<[1], [0], [0], [1], [0, 0, 1, 1], [], []>} : vector<8x4xf32>, vector<4x256xf32>, vector<8x256xf32> -> vector<8x256xf32>
    %48 = arith.addf %42, %47 : vector<8x256xf32>
    %c240_i32_27 = arith.constant 240 : i32
    %49 = tpu.dynamic_rotate %2 by %c240_i32_27 dim 1 : vector<4x256xf32>, i32 -> vector<4x256xf32>
    %50 = arith.select %9, %49, %2 : vector<4x256xi1>, vector<4x256xf32>
    %c1_i32_28 = arith.constant 1 : i32
    %51 = tpu.dynamic_rotate %50 by %c1_i32_28 dim 1 : vector<4x256xf32>, i32 -> vector<4x256xf32>
    %52 = arith.select %11, %51, %50 : vector<4x256xi1>, vector<4x256xf32>
    %c6 = arith.constant 6 : index
    %c0_29 = arith.constant 0 : index
    %c0_30 = arith.constant 0 : index
    %53 = vector.load %arg3[%c6, %c0_29, %c0_30] : memref<9x8x4xf32, #tpu.memory_space<vmem>>, vector<1x8x4xf32>
    %54 = vector.shape_cast %53 : vector<1x8x4xf32> to vector<8x4xf32>
    %cst_31 = arith.constant dense<0.000000e+00> : vector<8x256xf32>
    %55 = tpu.matmul %54, %52, %cst_31 {dimension_numbers = #tpu.dot_dimension_numbers<[1], [0], [0], [1], [0, 0, 1, 1], [], []>} : vector<8x4xf32>, vector<4x256xf32>, vector<8x256xf32> -> vector<8x256xf32>
    %56 = arith.addf %48, %55 : vector<8x256xf32>
    %c7 = arith.constant 7 : index
    %c0_32 = arith.constant 0 : index
    %c0_33 = arith.constant 0 : index
    %57 = vector.load %arg3[%c7, %c0_32, %c0_33] : memref<9x8x4xf32, #tpu.memory_space<vmem>>, vector<1x8x4xf32>
    %58 = vector.shape_cast %57 : vector<1x8x4xf32> to vector<8x4xf32>
    %cst_34 = arith.constant dense<0.000000e+00> : vector<8x256xf32>
    %59 = tpu.matmul %58, %50, %cst_34 {dimension_numbers = #tpu.dot_dimension_numbers<[1], [0], [0], [1], [0, 0, 1, 1], [], []>} : vector<8x4xf32>, vector<4x256xf32>, vector<8x256xf32> -> vector<8x256xf32>
    %60 = arith.addf %56, %59 : vector<8x256xf32>
    %c255_i32_35 = arith.constant 255 : i32
    %61 = tpu.dynamic_rotate %50 by %c255_i32_35 dim 1 : vector<4x256xf32>, i32 -> vector<4x256xf32>
    %62 = arith.select %13, %61, %50 : vector<4x256xi1>, vector<4x256xf32>
    %c8 = arith.constant 8 : index
    %c0_36 = arith.constant 0 : index
    %c0_37 = arith.constant 0 : index
    %63 = vector.load %arg3[%c8, %c0_36, %c0_37] : memref<9x8x4xf32, #tpu.memory_space<vmem>>, vector<1x8x4xf32>
    %64 = vector.shape_cast %63 : vector<1x8x4xf32> to vector<8x4xf32>
    %cst_38 = arith.constant dense<0.000000e+00> : vector<8x256xf32>
    %65 = tpu.matmul %64, %62, %cst_38 {dimension_numbers = #tpu.dot_dimension_numbers<[1], [0], [0], [1], [0, 0, 1, 1], [], []>} : vector<8x4xf32>, vector<4x256xf32>, vector<8x256xf32> -> vector<8x256xf32>
    %66 = arith.addf %60, %65 : vector<8x256xf32>
    %c0_39 = arith.constant 0 : index
    %c0_40 = arith.constant 0 : index
    %67 = vector.load %arg4[%c0_39, %c0_40] : memref<8x1xf32, #tpu.memory_space<vmem>>, vector<8x1xf32>
    %68 = vector.broadcast %67 : vector<8x1xf32> to vector<8x256xf32>
    %69 = arith.addf %66, %68 : vector<8x256xf32>
    %cst_41 = arith.constant 0.000000e+00 : f32
    %70 = vector.broadcast %cst_41 : f32 to vector<8x256xf32>
    %71 = arith.maximumf %69, %70 : vector<8x256xf32>
    %72 = tpu.iota {dimensions = array<i32: 1>} : vector<8x256xi32>
    %73 = vector.shape_cast %0 : vector<1x256xi32> to vector<1x256xi32>
    %74 = vector.broadcast %73 : vector<1x256xi32> to vector<8x256xi32>
    %c16_i32_42 = arith.constant 16 : i32
    %75 = vector.broadcast %c16_i32_42 : i32 to vector<8x256xi32>
    %76 = arith.cmpi sge, %72, %75 : vector<8x256xi32>
    %c240_i32_43 = arith.constant 240 : i32
    %77 = vector.broadcast %c240_i32_43 : i32 to vector<8x256xi32>
    %78 = arith.cmpi slt, %72, %77 : vector<8x256xi32>
    %c1_i32_44 = arith.constant 1 : i32
    %79 = vector.broadcast %c1_i32_44 : i32 to vector<8x256xi32>
    %80 = arith.cmpi sge, %74, %79 : vector<8x256xi32>
    %c14_i32_45 = arith.constant 14 : i32
    %81 = vector.broadcast %c14_i32_45 : i32 to vector<8x256xi32>
    %82 = arith.cmpi sle, %74, %81 : vector<8x256xi32>
    %cst_46 = arith.constant 0.000000e+00 : f32
    %83 = vector.broadcast %cst_46 : f32 to vector<8x256xf32>
    %c16_i32_47 = arith.constant 16 : i32
    %84 = tpu.dynamic_rotate %71 by %c16_i32_47 dim 1 : vector<8x256xf32>, i32 -> vector<8x256xf32>
    %85 = arith.select %76, %84, %71 : vector<8x256xi1>, vector<8x256xf32>
    %c1_i32_48 = arith.constant 1 : i32
    %86 = tpu.dynamic_rotate %85 by %c1_i32_48 dim 1 : vector<8x256xf32>, i32 -> vector<8x256xf32>
    %87 = arith.select %80, %86, %85 : vector<8x256xi1>, vector<8x256xf32>
    %c0_49 = arith.constant 0 : index
    %c0_50 = arith.constant 0 : index
    %c0_51 = arith.constant 0 : index
    %88 = vector.load %arg5[%c0_49, %c0_50, %c0_51] : memref<9x8x8xf32, #tpu.memory_space<vmem>>, vector<1x8x8xf32>
    %89 = vector.shape_cast %88 : vector<1x8x8xf32> to vector<8x8xf32>
    %cst_52 = arith.constant dense<0.000000e+00> : vector<8x256xf32>
    %90 = tpu.matmul %89, %87, %cst_52 {dimension_numbers = #tpu.dot_dimension_numbers<[1], [0], [0], [1], [0, 0, 1, 1], [], []>} : vector<8x8xf32>, vector<8x256xf32>, vector<8x256xf32> -> vector<8x256xf32>
    %91 = arith.addf %83, %90 : vector<8x256xf32>
    %c1_53 = arith.constant 1 : index
    %c0_54 = arith.constant 0 : index
    %c0_55 = arith.constant 0 : index
    %92 = vector.load %arg5[%c1_53, %c0_54, %c0_55] : memref<9x8x8xf32, #tpu.memory_space<vmem>>, vector<1x8x8xf32>
    %93 = vector.shape_cast %92 : vector<1x8x8xf32> to vector<8x8xf32>
    %cst_56 = arith.constant dense<0.000000e+00> : vector<8x256xf32>
    %94 = tpu.matmul %93, %85, %cst_56 {dimension_numbers = #tpu.dot_dimension_numbers<[1], [0], [0], [1], [0, 0, 1, 1], [], []>} : vector<8x8xf32>, vector<8x256xf32>, vector<8x256xf32> -> vector<8x256xf32>
    %95 = arith.addf %91, %94 : vector<8x256xf32>
    %c255_i32_57 = arith.constant 255 : i32
    %96 = tpu.dynamic_rotate %85 by %c255_i32_57 dim 1 : vector<8x256xf32>, i32 -> vector<8x256xf32>
    %97 = arith.select %82, %96, %85 : vector<8x256xi1>, vector<8x256xf32>
    %c2_58 = arith.constant 2 : index
    %c0_59 = arith.constant 0 : index
    %c0_60 = arith.constant 0 : index
    %98 = vector.load %arg5[%c2_58, %c0_59, %c0_60] : memref<9x8x8xf32, #tpu.memory_space<vmem>>, vector<1x8x8xf32>
    %99 = vector.shape_cast %98 : vector<1x8x8xf32> to vector<8x8xf32>
    %cst_61 = arith.constant dense<0.000000e+00> : vector<8x256xf32>
    %100 = tpu.matmul %99, %97, %cst_61 {dimension_numbers = #tpu.dot_dimension_numbers<[1], [0], [0], [1], [0, 0, 1, 1], [], []>} : vector<8x8xf32>, vector<8x256xf32>, vector<8x256xf32> -> vector<8x256xf32>
    %101 = arith.addf %95, %100 : vector<8x256xf32>
    %c1_i32_62 = arith.constant 1 : i32
    %102 = tpu.dynamic_rotate %71 by %c1_i32_62 dim 1 : vector<8x256xf32>, i32 -> vector<8x256xf32>
    %103 = arith.select %80, %102, %71 : vector<8x256xi1>, vector<8x256xf32>
    %c3_63 = arith.constant 3 : index
    %c0_64 = arith.constant 0 : index
    %c0_65 = arith.constant 0 : index
    %104 = vector.load %arg5[%c3_63, %c0_64, %c0_65] : memref<9x8x8xf32, #tpu.memory_space<vmem>>, vector<1x8x8xf32>
    %105 = vector.shape_cast %104 : vector<1x8x8xf32> to vector<8x8xf32>
    %cst_66 = arith.constant dense<0.000000e+00> : vector<8x256xf32>
    %106 = tpu.matmul %105, %103, %cst_66 {dimension_numbers = #tpu.dot_dimension_numbers<[1], [0], [0], [1], [0, 0, 1, 1], [], []>} : vector<8x8xf32>, vector<8x256xf32>, vector<8x256xf32> -> vector<8x256xf32>
    %107 = arith.addf %101, %106 : vector<8x256xf32>
    %c4_67 = arith.constant 4 : index
    %c0_68 = arith.constant 0 : index
    %c0_69 = arith.constant 0 : index
    %108 = vector.load %arg5[%c4_67, %c0_68, %c0_69] : memref<9x8x8xf32, #tpu.memory_space<vmem>>, vector<1x8x8xf32>
    %109 = vector.shape_cast %108 : vector<1x8x8xf32> to vector<8x8xf32>
    %cst_70 = arith.constant dense<0.000000e+00> : vector<8x256xf32>
    %110 = tpu.matmul %109, %71, %cst_70 {dimension_numbers = #tpu.dot_dimension_numbers<[1], [0], [0], [1], [0, 0, 1, 1], [], []>} : vector<8x8xf32>, vector<8x256xf32>, vector<8x256xf32> -> vector<8x256xf32>
    %111 = arith.addf %107, %110 : vector<8x256xf32>
    %c255_i32_71 = arith.constant 255 : i32
    %112 = tpu.dynamic_rotate %71 by %c255_i32_71 dim 1 : vector<8x256xf32>, i32 -> vector<8x256xf32>
    %113 = arith.select %82, %112, %71 : vector<8x256xi1>, vector<8x256xf32>
    %c5_72 = arith.constant 5 : index
    %c0_73 = arith.constant 0 : index
    %c0_74 = arith.constant 0 : index
    %114 = vector.load %arg5[%c5_72, %c0_73, %c0_74] : memref<9x8x8xf32, #tpu.memory_space<vmem>>, vector<1x8x8xf32>
    %115 = vector.shape_cast %114 : vector<1x8x8xf32> to vector<8x8xf32>
    %cst_75 = arith.constant dense<0.000000e+00> : vector<8x256xf32>
    %116 = tpu.matmul %115, %113, %cst_75 {dimension_numbers = #tpu.dot_dimension_numbers<[1], [0], [0], [1], [0, 0, 1, 1], [], []>} : vector<8x8xf32>, vector<8x256xf32>, vector<8x256xf32> -> vector<8x256xf32>
    %117 = arith.addf %111, %116 : vector<8x256xf32>
    %c240_i32_76 = arith.constant 240 : i32
    %118 = tpu.dynamic_rotate %71 by %c240_i32_76 dim 1 : vector<8x256xf32>, i32 -> vector<8x256xf32>
    %119 = arith.select %78, %118, %71 : vector<8x256xi1>, vector<8x256xf32>
    %c1_i32_77 = arith.constant 1 : i32
    %120 = tpu.dynamic_rotate %119 by %c1_i32_77 dim 1 : vector<8x256xf32>, i32 -> vector<8x256xf32>
    %121 = arith.select %80, %120, %119 : vector<8x256xi1>, vector<8x256xf32>
    %c6_78 = arith.constant 6 : index
    %c0_79 = arith.constant 0 : index
    %c0_80 = arith.constant 0 : index
    %122 = vector.load %arg5[%c6_78, %c0_79, %c0_80] : memref<9x8x8xf32, #tpu.memory_space<vmem>>, vector<1x8x8xf32>
    %123 = vector.shape_cast %122 : vector<1x8x8xf32> to vector<8x8xf32>
    %cst_81 = arith.constant dense<0.000000e+00> : vector<8x256xf32>
    %124 = tpu.matmul %123, %121, %cst_81 {dimension_numbers = #tpu.dot_dimension_numbers<[1], [0], [0], [1], [0, 0, 1, 1], [], []>} : vector<8x8xf32>, vector<8x256xf32>, vector<8x256xf32> -> vector<8x256xf32>
    %125 = arith.addf %117, %124 : vector<8x256xf32>
    %c7_82 = arith.constant 7 : index
    %c0_83 = arith.constant 0 : index
    %c0_84 = arith.constant 0 : index
    %126 = vector.load %arg5[%c7_82, %c0_83, %c0_84] : memref<9x8x8xf32, #tpu.memory_space<vmem>>, vector<1x8x8xf32>
    %127 = vector.shape_cast %126 : vector<1x8x8xf32> to vector<8x8xf32>
    %cst_85 = arith.constant dense<0.000000e+00> : vector<8x256xf32>
    %128 = tpu.matmul %127, %119, %cst_85 {dimension_numbers = #tpu.dot_dimension_numbers<[1], [0], [0], [1], [0, 0, 1, 1], [], []>} : vector<8x8xf32>, vector<8x256xf32>, vector<8x256xf32> -> vector<8x256xf32>
    %129 = arith.addf %125, %128 : vector<8x256xf32>
    %c255_i32_86 = arith.constant 255 : i32
    %130 = tpu.dynamic_rotate %119 by %c255_i32_86 dim 1 : vector<8x256xf32>, i32 -> vector<8x256xf32>
    %131 = arith.select %82, %130, %119 : vector<8x256xi1>, vector<8x256xf32>
    %c8_87 = arith.constant 8 : index
    %c0_88 = arith.constant 0 : index
    %c0_89 = arith.constant 0 : index
    %132 = vector.load %arg5[%c8_87, %c0_88, %c0_89] : memref<9x8x8xf32, #tpu.memory_space<vmem>>, vector<1x8x8xf32>
    %133 = vector.shape_cast %132 : vector<1x8x8xf32> to vector<8x8xf32>
    %cst_90 = arith.constant dense<0.000000e+00> : vector<8x256xf32>
    %134 = tpu.matmul %133, %131, %cst_90 {dimension_numbers = #tpu.dot_dimension_numbers<[1], [0], [0], [1], [0, 0, 1, 1], [], []>} : vector<8x8xf32>, vector<8x256xf32>, vector<8x256xf32> -> vector<8x256xf32>
    %135 = arith.addf %129, %134 : vector<8x256xf32>
    %c0_91 = arith.constant 0 : index
    %c0_92 = arith.constant 0 : index
    %136 = vector.load %arg6[%c0_91, %c0_92] : memref<8x1xf32, #tpu.memory_space<vmem>>, vector<8x1xf32>
    %137 = vector.broadcast %136 : vector<8x1xf32> to vector<8x256xf32>
    %138 = arith.addf %135, %137 : vector<8x256xf32>
    %cst_93 = arith.constant 0.000000e+00 : f32
    %139 = vector.broadcast %cst_93 : f32 to vector<8x256xf32>
    %140 = arith.maximumf %138, %139 : vector<8x256xf32>
    %c0_94 = arith.constant 0 : index
    %c0_95 = arith.constant 0 : index
    %c0_96 = arith.constant 0 : index
    %141 = vector.load %arg7[%c0_94, %c0_95, %c0_96] : memref<1x8x256xf32, #tpu.memory_space<vmem>>, vector<1x8x256xf32>
    %142 = vector.shape_cast %141 : vector<1x8x256xf32> to vector<8x256xf32>
    %143 = vector.shape_cast %140 : vector<8x256xf32> to vector<1x8x256xf32>
    tpu.vector_store %arg7[%c0_94, %c0_95, %c0_96], %143 {strides = array<i32>} : memref<1x8x256xf32, #tpu.memory_space<vmem>>, vector<1x8x256xf32>,
    return
  }
  func.func @transform_0(%arg0: i32) -> (i32, i32) {
    %c0_i32 = arith.constant 0 : i32
    %c0_i32_0 = arith.constant 0 : i32
    %c0_i32_1 = arith.constant 0 : i32
    return %c0_i32, %c0_i32_0 : i32, i32
  }
  func.func @transform_1(%arg0: i32) -> (i32, i32, i32) {
    %c0_i32 = arith.constant 0 : i32
    %c0_i32_0 = arith.constant 0 : i32
    %c0_i32_1 = arith.constant 0 : i32
    return %arg0, %c0_i32, %c0_i32_0 : i32, i32, i32
  }
  func.func @transform_2(%arg0: i32) -> (i32, i32, i32) {
    %c0_i32 = arith.constant 0 : i32
    %c0_i32_0 = arith.constant 0 : i32
    %c0_i32_1 = arith.constant 0 : i32
    %c0_i32_2 = arith.constant 0 : i32
    return %c0_i32, %c0_i32_0, %c0_i32_1 : i32, i32, i32
  }
  func.func @transform_3(%arg0: i32) -> (i32, i32) {
    %c0_i32 = arith.constant 0 : i32
    %c0_i32_0 = arith.constant 0 : i32
    %c0_i32_1 = arith.constant 0 : i32
    return %c0_i32, %c0_i32_0 : i32, i32
  }
  func.func @transform_4(%arg0: i32) -> (i32, i32, i32) {
    %c0_i32 = arith.constant 0 : i32
    %c0_i32_0 = arith.constant 0 : i32
    %c0_i32_1 = arith.constant 0 : i32
    %c0_i32_2 = arith.constant 0 : i32
    return %c0_i32, %c0_i32_0, %c0_i32_1 : i32, i32, i32
  }
  func.func @transform_5(%arg0: i32) -> (i32, i32) {
    %c0_i32 = arith.constant 0 : i32
    %c0_i32_0 = arith.constant 0 : i32
    %c0_i32_1 = arith.constant 0 : i32
    return %c0_i32, %c0_i32_0 : i32, i32
  }
  func.func @transform_6(%arg0: i32) -> (i32, i32, i32) {
    %c0_i32 = arith.constant 0 : i32
    %c0_i32_0 = arith.constant 0 : i32
    %c0_i32_1 = arith.constant 0 : i32
    return %arg0, %c0_i32, %c0_i32_0 : i32, i32, i32
  }
}

</mosaic_0001>

<llo_original>
// kernel: conv_block_init.1
$region0: #{conv_block_init.1}
  #allocation0 [shape = 'u32[]', space=smem, size = 0x4, offset = 0x4, fixed_abs, tag = 'smem constant byte address 0x4 - core index']
  #allocation1 [shape = 'u32[72,128]{1,0:T(1,128)}', space=vmem, size = 0x9000, scoped, tag = 'internal scratch']
  %s0 = inlined_call_operand.vmem [shape: s32[1,256], index: 0, kind: input, shape index: {}]
  %s1 = inlined_call_operand.vmem [shape: f32[2,4,256], index: 1, kind: input, shape index: {}]
  %s2 = inlined_call_operand.vmem [shape: f32[9,8,4], index: 2, kind: input, shape index: {}]
  %s3 = inlined_call_operand.vmem [shape: f32[8,1], index: 3, kind: input, shape index: {}]
  %s4 = inlined_call_operand.vmem [shape: f32[9,8,8], index: 4, kind: input, shape index: {}]
  %s5 = inlined_call_operand.vmem [shape: f32[8,1], index: 5, kind: input, shape index: {}]
  %s6 = inlined_call_operand.vmem [shape: f32[2,8,256], index: 6, kind: output, shape index: {}]
  %s7 = sld [smem:[#allocation0]]
  $region57: #{conv_block_init.1} parent=0
    _
  %s9 = ssub.s32 1, %s7
  %s10 = scalar_select 0, %s9, %s7
  loop: start=0, step=1, limit=4
  $region2: #{conv_block_init.1} parent=0 // loop_pre_header
    _
  $region3: #{conv_block_init.1} parent=0 // loop_header
    %s12 = sphi 0, %s16
    %p13 = scmp.ge.s32.totalorder %s12, 4
    %s20 = sphi 0, %s20
    %s22 = sphi 0, %s20
    %s23 = sphi 0, %s22
    %s37 = sphi 0, %s23
    %s43 = sphi 0, %s45
    %s46 = sphi 0, %s43
    %s47 = sphi 0, %s46
    %s63 = sphi 0, %s47
    %s67 = sphi 0, %s67
    %s69 = sphi 0, %s67
    %s70 = sphi 0, %s69
    %s84 = sphi 0, %s70
    %s88 = sphi 0, %s88
    %s90 = sphi 0, %s88
    %s91 = sphi 0, %s90
    %s105 = sphi 0, %s91
    %s109 = sphi 0, %s109
    %s111 = sphi 0, %s109
    %s112 = sphi 0, %s111
    %s126 = sphi 0, %s112
    %s130 = sphi 0, %s130
    %s132 = sphi 0, %s130
    %s133 = sphi 0, %s132
    %s147 = sphi 0, %s133
    %s153 = sphi 0, %s155
    %s156 = sphi 0, %s153
    %s157 = sphi 0, %s156
    %s173 = sphi 0, %s157
  $region4: #{conv_block_init.1} parent=0 // loop_header_branch
    %15 = sbr.rel (%p13) target = $region8
  $region5: #{conv_block_init.1} parent=0 // loop_body
    %s17 = ssub.s32 %s12, 1
    %s18 = ssub.s32 %s12, 2
    %s19 = sadd.s32 %s12, 1
    %s21 = sadd.s32 %s20, 1
    %p24 = scmp.eq.s32.totalorder %s12, 1
    %p25 = scmp.ne.s32.totalorder %s20, %s22
    %p26 = scmp.eq.s32.totalorder %s12, 0
    %p27 = por %p25, %p26
    %p28 = scmp.ne.s32.totalorder %s20, %s22
    %p29 = scmp.eq.s32.totalorder %s17, 1
    %p30 = por %p28, %p29
    %p31 = scmp.ne.s32.totalorder %s22, %s23
    %p32 = scmp.eq.s32.totalorder %s17, 0
    %p33 = por %p31, %p32
    %p34 = scmp.ne.s32.totalorder %s22, %s23
    %p35 = scmp.eq.s32.totalorder %s18, 1
    %p36 = por %p34, %p35
    %p38 = scmp.ne.s32.totalorder %s23, %s37
    %p39 = scmp.eq.s32.totalorder %s18, 0
    %p40 = por %p38, %p39
    %s41 = ssub.s32 %s12, %s19
    %p42 = scmp.eq.s32.totalorder %s41, 0
    %s44 = sadd.s32 %s43, 1
    %s45 = scalar_select %p42, %s43, %s44
    %p48 = pneg %p42
    %p49 = scmp.eq.s32.totalorder %s12, 1
    %p50 = por %p48, %p49
    %p51 = scmp.ne.s32.totalorder %s43, %s46
    %p52 = scmp.eq.s32.totalorder %s12, 0
    %p53 = por %p51, %p52
    %p54 = scmp.ne.s32.totalorder %s43, %s46
    %p55 = scmp.eq.s32.totalorder %s17, 1
    %p56 = por %p54, %p55
    %p57 = scmp.ne.s32.totalorder %s46, %s47
    %p58 = scmp.eq.s32.totalorder %s17, 0
    %p59 = por %p57, %p58
    %p60 = scmp.ne.s32.totalorder %s46, %s47
    %p61 = scmp.eq.s32.totalorder %s18, 1
    %p62 = por %p60, %p61
    %p64 = scmp.ne.s32.totalorder %s47, %s63
    %p65 = scmp.eq.s32.totalorder %s18, 0
    %p66 = por %p64, %p65
    %s68 = sadd.s32 %s67, 1
    %p71 = scmp.eq.s32.totalorder %s12, 1
    %p72 = scmp.ne.s32.totalorder %s67, %s69
    %p73 = scmp.eq.s32.totalorder %s12, 0
    %p74 = por %p72, %p73
    %p75 = scmp.ne.s32.totalorder %s67, %s69
    %p76 = scmp.eq.s32.totalorder %s17, 1
    %p77 = por %p75, %p76
    %p78 = scmp.ne.s32.totalorder %s69, %s70
    %p79 = scmp.eq.s32.totalorder %s17, 0
    %p80 = por %p78, %p79
    %p81 = scmp.ne.s32.totalorder %s69, %s70
    %p82 = scmp.eq.s32.totalorder %s18, 1
    %p83 = por %p81, %p82
    %p85 = scmp.ne.s32.totalorder %s70, %s84
    %p86 = scmp.eq.s32.totalorder %s18, 0
    %p87 = por %p85, %p86
    %s89 = sadd.s32 %s88, 1
    %p92 = scmp.eq.s32.totalorder %s12, 1
    %p93 = scmp.ne.s32.totalorder %s88, %s90
    %p94 = scmp.eq.s32.totalorder %s12, 0
    %p95 = por %p93, %p94
    %p96 = scmp.ne.s32.totalorder %s88, %s90
    %p97 = scmp.eq.s32.totalorder %s17, 1
    %p98 = por %p96, %p97
    %p99 = scmp.ne.s32.totalorder %s90, %s91
    %p100 = scmp.eq.s32.totalorder %s17, 0
    %p101 = por %p99, %p100
    %p102 = scmp.ne.s32.totalorder %s90, %s91
    %p103 = scmp.eq.s32.totalorder %s18, 1
    %p104 = por %p102, %p103
    %p106 = scmp.ne.s32.totalorder %s91, %s105
    %p107 = scmp.eq.s32.totalorder %s18, 0
    %p108 = por %p106, %p107
    %s110 = sadd.s32 %s109, 1
    %p113 = scmp.eq.s32.totalorder %s12, 1
    %p114 = scmp.ne.s32.totalorder %s109, %s111
    %p115 = scmp.eq.s32.totalorder %s12, 0
    %p116 = por %p114, %p115
    %p117 = scmp.ne.s32.totalorder %s109, %s111
    %p118 = scmp.eq.s32.totalorder %s17, 1
    %p119 = por %p117, %p118
    %p120 = scmp.ne.s32.totalorder %s111, %s112
    %p121 = scmp.eq.s32.totalorder %s17, 0
    %p122 = por %p120, %p121
    %p123 = scmp.ne.s32.totalorder %s111, %s112
    %p124 = scmp.eq.s32.totalorder %s18, 1
    %p125 = por %p123, %p124
    %p127 = scmp.ne.s32.totalorder %s112, %s126
    %p128 = scmp.eq.s32.totalorder %s18, 0
    %p129 = por %p127, %p128
    %s131 = sadd.s32 %s130, 1
    %p134 = scmp.eq.s32.totalorder %s12, 1
    %p135 = scmp.ne.s32.totalorder %s130, %s132
    %p136 = scmp.eq.s32.totalorder %s12, 0
    %p137 = por %p135, %p136
    %p138 = scmp.ne.s32.totalorder %s130, %s132
    %p139 = scmp.eq.s32.totalorder %s17, 1
    %p140 = por %p138, %p139
    %p141 = scmp.ne.s32.totalorder %s132, %s133
    %p142 = scmp.eq.s32.totalorder %s17, 0
    %p143 = por %p141, %p142
    %p144 = scmp.ne.s32.totalorder %s132, %s133
    %p145 = scmp.eq.s32.totalorder %s18, 1
    %p146 = por %p144, %p145
    %p148 = scmp.ne.s32.totalorder %s133, %s147
    %p149 = scmp.eq.s32.totalorder %s18, 0
    %p150 = por %p148, %p149
    %s151 = ssub.s32 %s12, %s19
    %p152 = scmp.eq.s32.totalorder %s151, 0
    %s154 = sadd.s32 %s153, 1
    %s155 = scalar_select %p152, %s153, %s154
    %p158 = pneg %p152
    %p159 = scmp.eq.s32.totalorder %s12, 1
    %p160 = por %p158, %p159
    %p161 = scmp.ne.s32.totalorder %s153, %s156
    %p162 = scmp.eq.s32.totalorder %s12, 0
    %p163 = por %p161, %p162
    %p164 = scmp.ne.s32.totalorder %s153, %s156
    %p165 = scmp.eq.s32.totalorder %s17, 1
    %p166 = por %p164, %p165
    %p167 = scmp.ne.s32.totalorder %s156, %s157
    %p168 = scmp.eq.s32.totalorder %s17, 0
    %p169 = por %p167, %p168
    %p170 = scmp.ne.s32.totalorder %s156, %s157
    %p171 = scmp.eq.s32.totalorder %s18, 1
    %p172 = por %p170, %p171
    %p174 = scmp.ne.s32.totalorder %s157, %s173
    %p175 = scmp.eq.s32.totalorder %s18, 0
    %p176 = por %p174, %p175
    %p177 = scmp.le.s32.totalorder 1, %s12
    %p178 = scmp.lt.s32.totalorder %s12, 3
    %p179 = pnand %p177, %p178
    %p180 = pneg %p179
    // Predicated region
    $region9: #{conv_block_init.1} parent=5 // pred_check
      _
    $region10: #{conv_block_init.1} parent=5 // pred_check_branch
      %182 = sbr.rel (%p179) target = $region12
    $region11: #{conv_block_init.1} parent=5 // pred_region
      %s183 = ssub.s32 %s12, 1
      // Predicated region
      $region13: #{conv_block_init.1} parent=11 // pred_check
        %p184 = pneg %p33
      $region14: #{conv_block_init.1} parent=11 // pred_check_branch
        %186 = sbr.rel (%p184) target = $region16
      $region15: #{conv_block_init.1} parent=11 // pred_region
        _
      $region16: #{conv_block_init.1} parent=11 // pred_fallthru
        _
      // Predicated region
      $region17: #{conv_block_init.1} parent=11 // pred_check
        %p187 = pneg %p80
      $region18: #{conv_block_init.1} parent=11 // pred_check_branch
        %189 = sbr.rel (%p187) target = $region20
      $region19: #{conv_block_init.1} parent=11 // pred_region
        _
      $region20: #{conv_block_init.1} parent=11 // pred_fallthru
        _
      // Predicated region
      $region21: #{conv_block_init.1} parent=11 // pred_check
        %p190 = pneg %p101
      $region22: #{conv_block_init.1} parent=11 // pred_check_branch
        %192 = sbr.rel (%p190) target = $region24
      $region23: #{conv_block_init.1} parent=11 // pred_region
        _
      $region24: #{conv_block_init.1} parent=11 // pred_fallthru
        _
      // Predicated region
      $region25: #{conv_block_init.1} parent=11 // pred_check
        %p193 = pneg %p122
      $region26: #{conv_block_init.1} parent=11 // pred_check_branch
        %195 = sbr.rel (%p193) target = $region28
      $region27: #{conv_block_init.1} parent=11 // pred_region
        _
      $region28: #{conv_block_init.1} parent=11 // pred_fallthru
        _
      // Predicated region
      $region29: #{conv_block_init.1} parent=11 // pred_check
        %p196 = pneg %p143
      $region30: #{conv_block_init.1} parent=11 // pred_check_branch
        %198 = sbr.rel (%p196) target = $region32
      $region31: #{conv_block_init.1} parent=11 // pred_region
        _
      $region32: #{conv_block_init.1} parent=11 // pred_fallthru
        _
    $region12: #{conv_block_init.1} parent=5 // pred_fallthru
      _
    %p199 = scmp.lt.s32.totalorder %s12, 2
    // Predicated region
    $region33: #{conv_block_init.1} parent=5 // pred_check
      %p200 = pneg %p199
    $region34: #{conv_block_init.1} parent=5 // pred_check_branch
      %202 = sbr.rel (%p200) target = $region36
    $region35: #{conv_block_init.1} parent=5 // pred_region
      // Predicated region
      $region37: #{conv_block_init.1} parent=35 // pred_check
        %p203 = pneg %p53
      $region38: #{conv_block_init.1} parent=35 // pred_check_branch
        %205 = sbr.rel (%p203) target = $region40
      $region39: #{conv_block_init.1} parent=35 // pred_region
        %p206 = scmp.lt.s32.totalorder %s12, 1
        %s207 = scalar_select %p206, %s12, 1
        %s208 = smul.addr %s207, 2
        %s209 = smul.addr %s208, 4
        %s210 = scalar_lea.vmem %s1, %s209
      $region40: #{conv_block_init.1} parent=35 // pred_fallthru
        _
    $region36: #{conv_block_init.1} parent=5 // pred_fallthru
      _
    %p211 = scmp.le.s32.totalorder 1, %s12
    %p212 = scmp.lt.s32.totalorder %s12, 3
    %p213 = pnand %p211, %p212
    %p214 = pneg %p213
    // Predicated region
    $region41: #{conv_block_init.1} parent=5 // pred_check
      _
    $region42: #{conv_block_init.1} parent=5 // pred_check_branch
      %216 = sbr.rel (%p213) target = $region44
    $region43: #{conv_block_init.1} parent=5 // pred_region
      %s217 = ssub.s32 %s12, 1
      %p218 = pneg %p33
      %p219 = pneg %p30
      %p220 = scmp.lt.s32.totalorder %s17, 1
      %s221 = scalar_select %p220, %s17, 1
      %s222 = smul.addr %s221, 2
      %s223 = smul.addr %s222, 4
      %s224 = scalar_lea.vmem %s1, %s223
      %p225 = pneg %p59
      %p226 = pneg %p56
      %p227 = pneg %p80
      %p228 = pneg %p77
      %p229 = pneg %p101
      %p230 = pneg %p98
      %p231 = pneg %p122
      %p232 = pneg %p119
      %p233 = pneg %p143
      %p234 = pneg %p140
      %p235 = pneg %p169
      %p236 = pneg %p166
      %p237 = scmp.lt.s32.totalorder %s17, 1
      %s238 = scalar_select %p237, %s17, 1
      %s239 = smul.addr %s238, 2
      %s240 = smul.addr %s239, 8
      %s241 = scalar_lea.vmem %s6, %s240
      %p242 = scmp.lt.s32.totalorder %s17, 1
      %s243 = scalar_select %p242, %s17, 1
      %s244 = smul.addr %s243, 2
      %s245 = smul.addr %s244, 4
      %s246 = scalar_lea.vmem %s1, %s245
      %p247 = scmp.lt.s32.totalorder %s17, 1
      %s248 = scalar_select %p247, %s17, 1
      %s249 = smul.addr %s248, 2
      %s250 = smul.addr %s249, 8
      %s251 = scalar_lea.vmem %s6, %s250
      %v252 = vld [vmem:[%s0] sm:$0x3]
      %v253 = vld [vmem:[%s246] sm:$0xff]
      %v254 = vlaneseq
      %v255 = vand.u32 %v254, 127
      %v256 = vadd.s32 %v255, 128
      %v257 = vperm.slane %v252, 0
      %v258 = vperm.slane %v252, 1
      %vm259 = vcmp.ge.s32.totalorder %v255, 16
      %vm260 = vcmp.ge.s32.totalorder %v256, 16
      %vm261 = vcmp.lt.s32.totalorder %v255, 240
      %vm262 = vcmp.lt.s32.totalorder %v256, 240
      %vm263 = vcmp.ge.s32.totalorder %v257, 1
      %vm264 = vcmp.ge.s32.totalorder %v258, 1
      %vm265 = vcmp.le.s32.totalorder %v257, 14
      %vm266 = vcmp.le.s32.totalorder %v258, 14
      %268 = vst [vmem:[#allocation1] ss:$2 sm:$0xff] %v253
      %v269 = vld.sshfl [vmem:[#allocation1] sm:$0xff pattern:$0x75316420]
      %v270 = vld.sshfl [vmem:[#allocation1 + $0x8] sm:$0xff pattern:$0x75316420]
      %273 = vrot.lane.b32.xlu0 %v269, 16
      %v274 = vpop.permute.xlu0 %273
      %275 = vrot.lane.b32.xlu0 %v270, 16
      %v276 = vpop.permute.xlu0 %275
      %vm277 = vcmp.lt.s32.totalorder %v255, 16
      %v278 = vsel %vm277, %v274, %v276
      %v279 = vsel %vm277, %v276, %v274
      %280 = vst [vmem:[#allocation1] ss:$2 sm:$0xff] %v253
      %v281 = vld.sshfl [vmem:[#allocation1] sm:$0xff pattern:$0x75316420]
      %v282 = vld.sshfl [vmem:[#allocation1 + $0x8] sm:$0xff pattern:$0x75316420]
      %v285 = vsel %vm259, %v279, %v281
      %v286 = vsel %vm260, %v278, %v282
      %287 = vrot.lane.b32.xlu0 %v285, 1
      %v288 = vpop.permute.xlu0 %287
      %289 = vrot.lane.b32.xlu0 %v286, 1
      %v290 = vpop.permute.xlu0 %289
      %vm291 = vcmp.lt.s32.totalorder %v255, 1
      %v292 = vsel %vm291, %v288, %v290
      %v293 = vsel %vm291, %v290, %v288
      %v294 = vsel %vm263, %v293, %v285
      %v295 = vsel %vm264, %v292, %v286
      %v296 = vld [vmem:[%s2] sm:$0xff]
      %s297 = scalar_lea.vmem %s2, 8
      %v298 = vld [vmem:[%s297] sm:$0xff]
      %vm299 = vcmask 31744
      %v301 = vsel %vm299, %v298, 0
      %vm303 = vcmask 1043456
      %v305 = vsel %vm303, %v285, 0
      %v308 = vsel %vm303, %v286, 0
      %310 = vmatpush.msra.mxu0 0.0
      %311 = vmatpush.msra.mxu0 0.0
      %312 = vmatpush.msra.mxu0 0.0
      %313 = vmatpush.msra.mxu0 0.0
      %314 = vmatpush.msra.mxu0 0.0
      %315 = vmatpush.msra.mxu0 0.0
      %316 = vmatpush.msra.mxu0 0.0
      %317 = vmatpush.msra.mxu0 0.0
      %318 = vmatpush.msra.mxu0 0.0
      %319 = vmatpush.msra.mxu0 0.0
      %320 = vmatpush.msra.mxu0 0.0
      %321 = vmatpush.msra.mxu0 0.0
      %322 = vmatpush.msra.mxu0 0.0
      %323 = vmatpush.msra.mxu0 0.0
      %324 = vmatpush.msra.mxu0 0.0
      %325 = vmatpush.msra.mxu0 %v305
      %326 = vmatmul.f32.gmra.mxu0 %v301
      %v327 = vpop.f32.mrf.mxu0
      %v328 = vadd.f32 0.0, %v327
      %329 = vdwg.mxu0
      %330 = vmatpush.msra.mxu0 0.0
      %331 = vmatpush.msra.mxu0 0.0
      %332 = vmatpush.msra.mxu0 0.0
      %333 = vmatpush.msra.mxu0 0.0
      %334 = vmatpush.msra.mxu0 0.0
      %335 = vmatpush.msra.mxu0 0.0
      %336 = vmatpush.msra.mxu0 0.0
      %337 = vmatpush.msra.mxu0 0.0
      %338 = vmatpush.msra.mxu0 0.0
      %339 = vmatpush.msra.mxu0 0.0
      %340 = vmatpush.msra.mxu0 0.0
      %341 = vmatpush.msra.mxu0 0.0
      %342 = vmatpush.msra.mxu0 0.0
      %343 = vmatpush.msra.mxu0 0.0
      %344 = vmatpush.msra.mxu0 0.0
      %345 = vmatpush.msra.mxu0 %v308
      %346 = vmatmul.f32.gmra.mxu0 %v301
      %v347 = vpop.f32.mrf.mxu0
      %v348 = vadd.f32 0.0, %v347
      %349 = vdwg.mxu0
      %v351 = vsel %vm299, %v296, 0
      %v354 = vsel %vm303, %v294, 0
      %v357 = vsel %vm303, %v295, 0
      %359 = vmatpush.msra.mxu0 0.0
      %360 = vmatpush.msra.mxu0 0.0
      %361 = vmatpush.msra.mxu0 0.0
      %362 = vmatpush.msra.mxu0 0.0
      %363 = vmatpush.msra.mxu0 0.0
      %364 = vmatpush.msra.mxu0 0.0
      %365 = vmatpush.msra.mxu0 0.0
      %366 = vmatpush.msra.mxu0 0.0
      %367 = vmatpush.msra.mxu0 0.0
      %368 = vmatpush.msra.mxu0 0.0
      %369 = vmatpush.msra.mxu0 0.0
      %370 = vmatpush.msra.mxu0 0.0
      %371 = vmatpush.msra.mxu0 0.0
      %372 = vmatpush.msra.mxu0 0.0
      %373 = vmatpush.msra.mxu0 0.0
      %374 = vmatpush.msra.mxu0 %v354
      %375 = vmatmul.f32.gmra.mxu0 %v351
      %v376 = vpop.f32.mrf.mxu0
      %v377 = vadd.f32 %v328, %v376
      %378 = vdwg.mxu0
      %379 = vmatpush.msra.mxu0 0.0
      %380 = vmatpush.msra.mxu0 0.0
      %381 = vmatpush.msra.mxu0 0.0
      %382 = vmatpush.msra.mxu0 0.0
      %383 = vmatpush.msra.mxu0 0.0
      %384 = vmatpush.msra.mxu0 0.0
      %385 = vmatpush.msra.mxu0 0.0
      %386 = vmatpush.msra.mxu0 0.0
      %387 = vmatpush.msra.mxu0 0.0
      %388 = vmatpush.msra.mxu0 0.0
      %389 = vmatpush.msra.mxu0 0.0
      %390 = vmatpush.msra.mxu0 0.0
      %391 = vmatpush.msra.mxu0 0.0
      %392 = vmatpush.msra.mxu0 0.0
      %393 = vmatpush.msra.mxu0 0.0
      %394 = vmatpush.msra.mxu0 %v357
      %395 = vmatmul.f32.gmra.mxu0 %v351
      %v396 = vpop.f32.mrf.mxu0
      %v397 = vadd.f32 %v348, %v396
      %398 = vdwg.mxu0
      %399 = vrot.lane.b32.xlu0 %v285, 127
      %v400 = vpop.permute.xlu0 %399
      %401 = vrot.lane.b32.xlu0 %v286, 127
      %v402 = vpop.permute.xlu0 %401
      %vm403 = vcmp.lt.s32.totalorder %v255, 127
      %v404 = vsel %vm403, %v400, %v402
      %v405 = vsel %vm403, %v402, %v400
      %v406 = vsel %vm265, %v404, %v285
      %v407 = vsel %vm266, %v405, %v286
      %s408 = scalar_lea.vmem %s2, 16
      %v409 = vld [vmem:[%s408] sm:$0xff]
      %v411 = vsel %vm299, %v409, 0
      %v414 = vsel %vm303, %v406, 0
      %v417 = vsel %vm303, %v407, 0
      %419 = vmatpush.msra.mxu0 0.0
      %420 = vmatpush.msra.mxu0 0.0
      %421 = vmatpush.msra.mxu0 0.0
      %422 = vmatpush.msra.mxu0 0.0
      %423 = vmatpush.msra.mxu0 0.0
      %424 = vmatpush.msra.mxu0 0.0
      %425 = vmatpush.msra.mxu0 0.0
      %426 = vmatpush.msra.mxu0 0.0
      %427 = vmatpush.msra.mxu0 0.0
      %428 = vmatpush.msra.mxu0 0.0
      %429 = vmatpush.msra.mxu0 0.0
      %430 = vmatpush.msra.mxu0 0.0
      %431 = vmatpush.msra.mxu0 0.0
      %432 = vmatpush.msra.mxu0 0.0
      %433 = vmatpush.msra.mxu0 0.0
      %434 = vmatpush.msra.mxu0 %v414
      %435 = vmatmul.f32.gmra.mxu0 %v411
      %v436 = vpop.f32.mrf.mxu0
      %v437 = vadd.f32 0.0, %v436
      %438 = vdwg.mxu0
      %439 = vmatpush.msra.mxu0 0.0
      %440 = vmatpush.msra.mxu0 0.0
      %441 = vmatpush.msra.mxu0 0.0
      %442 = vmatpush.msra.mxu0 0.0
      %443 = vmatpush.msra.mxu0 0.0
      %444 = vmatpush.msra.mxu0 0.0
      %445 = vmatpush.msra.mxu0 0.0
      %446 = vmatpush.msra.mxu0 0.0
      %447 = vmatpush.msra.mxu0 0.0
      %448 = vmatpush.msra.mxu0 0.0
      %449 = vmatpush.msra.mxu0 0.0
      %450 = vmatpush.msra.mxu0 0.0
      %451 = vmatpush.msra.mxu0 0.0
      %452 = vmatpush.msra.mxu0 0.0
      %453 = vmatpush.msra.mxu0 0.0
      %454 = vmatpush.msra.mxu0 %v417
      %455 = vmatmul.f32.gmra.mxu0 %v411
      %v456 = vpop.f32.mrf.mxu0
      %v457 = vadd.f32 0.0, %v456
      %458 = vdwg.mxu0
      %v459 = vadd.f32 %v377, %v437
      %v460 = vadd.f32 %v397, %v457
      %461 = vst [vmem:[#allocation1] ss:$2 sm:$0xff] %v253
      %v462 = vld.sshfl [vmem:[#allocation1] sm:$0xff pattern:$0x75316420]
      %v463 = vld.sshfl [vmem:[#allocation1 + $0x8] sm:$0xff pattern:$0x75316420]
      %466 = vrot.lane.b32.xlu0 %v462, 1
      %v467 = vpop.permute.xlu0 %466
      %468 = vrot.lane.b32.xlu0 %v463, 1
      %v469 = vpop.permute.xlu0 %468
      %v470 = vsel %vm291, %v467, %v469
      %v471 = vsel %vm291, %v469, %v467
      %472 = vst [vmem:[#allocation1] ss:$2 sm:$0xff] %v253
      %v473 = vld.sshfl [vmem:[#allocation1] sm:$0xff pattern:$0x75316420]
      %v474 = vld.sshfl [vmem:[#allocation1 + $0x8] sm:$0xff pattern:$0x75316420]
      %v477 = vsel %vm263, %v471, %v473
      %v478 = vsel %vm264, %v470, %v474
      %s479 = scalar_lea.vmem %s2, 24
      %v480 = vld [vmem:[%s479] sm:$0xff]
      %v482 = vsel %vm299, %v480, 0
      %v485 = vsel %vm303, %v477, 0
      %v488 = vsel %vm303, %v478, 0
      %490 = vmatpush.msra.mxu0 0.0
      %491 = vmatpush.msra.mxu0 0.0
      %492 = vmatpush.msra.mxu0 0.0
      %493 = vmatpush.msra.mxu0 0.0
      %494 = vmatpush.msra.mxu0 0.0
      %495 = vmatpush.msra.mxu0 0.0
      %496 = vmatpush.msra.mxu0 0.0
      %497 = vmatpush.msra.mxu0 0.0
      %498 = vmatpush.msra.mxu0 0.0
      %499 = vmatpush.msra.mxu0 0.0
      %500 = vmatpush.msra.mxu0 0.0
      %501 = vmatpush.msra.mxu0 0.0
      %502 = vmatpush.msra.mxu0 0.0
      %503 = vmatpush.msra.mxu0 0.0
      %504 = vmatpush.msra.mxu0 0.0
      %505 = vmatpush.msra.mxu0 %v485
      %506 = vmatmul.f32.gmra.mxu0 %v482
      %v507 = vpop.f32.mrf.mxu0
      %v508 = vadd.f32 0.0, %v507
      %509 = vdwg.mxu0
      %510 = vmatpush.msra.mxu0 0.0
      %511 = vmatpush.msra.mxu0 0.0
      %512 = vmatpush.msra.mxu0 0.0
      %513 = vmatpush.msra.mxu0 0.0
      %514 = vmatpush.msra.mxu0 0.0
      %515 = vmatpush.msra.mxu0 0.0
      %516 = vmatpush.msra.mxu0 0.0
      %517 = vmatpush.msra.mxu0 0.0
      %518 = vmatpush.msra.mxu0 0.0
      %519 = vmatpush.msra.mxu0 0.0
      %520 = vmatpush.msra.mxu0 0.0
      %521 = vmatpush.msra.mxu0 0.0
      %522 = vmatpush.msra.mxu0 0.0
      %523 = vmatpush.msra.mxu0 0.0
      %524 = vmatpush.msra.mxu0 0.0
      %525 = vmatpush.msra.mxu0 %v488
      %526 = vmatmul.f32.gmra.mxu0 %v482
      %v527 = vpop.f32.mrf.mxu0
      %v528 = vadd.f32 0.0, %v527
      %529 = vdwg.mxu0
      %v530 = vadd.f32 %v459, %v508
      %v531 = vadd.f32 %v460, %v528
      %s532 = scalar_lea.vmem %s2, 32
      %v533 = vld [vmem:[%s532] sm:$0xff]
      %534 = vst [vmem:[#allocation1] ss:$2 sm:$0xff] %v253
      %v535 = vld.sshfl [vmem:[#allocation1] sm:$0xff pattern:$0x75316420]
      %v536 = vld.sshfl [vmem:[#allocation1 + $0x8] sm:$0xff pattern:$0x75316420]
      %v538 = vsel %vm299, %v533, 0
      %v540 = vsel %vm303, %v535, 0
      %v542 = vsel %vm303, %v536, 0
      %544 = vmatpush.msra.mxu0 0.0
      %545 = vmatpush.msra.mxu0 0.0
      %546 = vmatpush.msra.mxu0 0.0
      %547 = vmatpush.msra.mxu0 0.0
      %548 = vmatpush.msra.mxu0 0.0
      %549 = vmatpush.msra.mxu0 0.0
      %550 = vmatpush.msra.mxu0 0.0
      %551 = vmatpush.msra.mxu0 0.0
      %552 = vmatpush.msra.mxu0 0.0
      %553 = vmatpush.msra.mxu0 0.0
      %554 = vmatpush.msra.mxu0 0.0
      %555 = vmatpush.msra.mxu0 0.0
      %556 = vmatpush.msra.mxu0 0.0
      %557 = vmatpush.msra.mxu0 0.0
      %558 = vmatpush.msra.mxu0 0.0
      %559 = vmatpush.msra.mxu0 %v540
      %560 = vmatmul.f32.gmra.mxu0 %v538
      %v561 = vpop.f32.mrf.mxu0
      %v562 = vadd.f32 0.0, %v561
      %563 = vdwg.mxu0
      %564 = vmatpush.msra.mxu0 0.0
      %565 = vmatpush.msra.mxu0 0.0
      %566 = vmatpush.msra.mxu0 0.0
      %567 = vmatpush.msra.mxu0 0.0
      %568 = vmatpush.msra.mxu0 0.0
      %569 = vmatpush.msra.mxu0 0.0
      %570 = vmatpush.msra.mxu0 0.0
      %571 = vmatpush.msra.mxu0 0.0
      %572 = vmatpush.msra.mxu0 0.0
      %573 = vmatpush.msra.mxu0 0.0
      %574 = vmatpush.msra.mxu0 0.0
      %575 = vmatpush.msra.mxu0 0.0
      %576 = vmatpush.msra.mxu0 0.0
      %577 = vmatpush.msra.mxu0 0.0
      %578 = vmatpush.msra.mxu0 0.0
      %579 = vmatpush.msra.mxu0 %v542
      %580 = vmatmul.f32.gmra.mxu0 %v538
      %v581 = vpop.f32.mrf.mxu0
      %v582 = vadd.f32 0.0, %v581
      %583 = vdwg.mxu0
      %v584 = vadd.f32 %v530, %v562
      %v585 = vadd.f32 %v531, %v582
      %586 = vst [vmem:[#allocation1] ss:$2 sm:$0xff] %v253
      %v587 = vld.sshfl [vmem:[#allocation1] sm:$0xff pattern:$0x75316420]
      %v588 = vld.sshfl [vmem:[#allocation1 + $0x8] sm:$0xff pattern:$0x75316420]
      %591 = vrot.lane.b32.xlu0 %v587, 127
      %v592 = vpop.permute.xlu0 %591
      %593 = vrot.lane.b32.xlu0 %v588, 127
      %v594 = vpop.permute.xlu0 %593
      %v595 = vsel %vm403, %v592, %v594
      %v596 = vsel %vm403, %v594, %v592
      %597 = vst [vmem:[#allocation1] ss:$2 sm:$0xff] %v253
      %v598 = vld.sshfl [vmem:[#allocation1] sm:$0xff pattern:$0x75316420]
      %v599 = vld.sshfl [vmem:[#allocation1 + $0x8] sm:$0xff pattern:$0x75316420]
      %v602 = vsel %vm265, %v595, %v598
      %v603 = vsel %vm266, %v596, %v599
      %s604 = scalar_lea.vmem %s2, 40
      %v605 = vld [vmem:[%s604] sm:$0xff]
      %v607 = vsel %vm299, %v605, 0
      %v610 = vsel %vm303, %v602, 0
      %v613 = vsel %vm303, %v603, 0
      %615 = vmatpush.msra.mxu0 0.0
      %616 = vmatpush.msra.mxu0 0.0
      %617 = vmatpush.msra.mxu0 0.0
      %618 = vmatpush.msra.mxu0 0.0
      %619 = vmatpush.msra.mxu0 0.0
      %620 = vmatpush.msra.mxu0 0.0
      %621 = vmatpush.msra.mxu0 0.0
      %622 = vmatpush.msra.mxu0 0.0
      %623 = vmatpush.msra.mxu0 0.0
      %624 = vmatpush.msra.mxu0 0.0
      %625 = vmatpush.msra.mxu0 0.0
      %626 = vmatpush.msra.mxu0 0.0
      %627 = vmatpush.msra.mxu0 0.0
      %628 = vmatpush.msra.mxu0 0.0
      %629 = vmatpush.msra.mxu0 0.0
      %630 = vmatpush.msra.mxu0 %v610
      %631 = vmatmul.f32.gmra.mxu0 %v607
      %v632 = vpop.f32.mrf.mxu0
      %v633 = vadd.f32 0.0, %v632
      %634 = vdwg.mxu0
      %635 = vmatpush.msra.mxu0 0.0
      %636 = vmatpush.msra.mxu0 0.0
      %637 = vmatpush.msra.mxu0 0.0
      %638 = vmatpush.msra.mxu0 0.0
      %639 = vmatpush.msra.mxu0 0.0
      %640 = vmatpush.msra.mxu0 0.0
      %641 = vmatpush.msra.mxu0 0.0
      %642 = vmatpush.msra.mxu0 0.0
      %643 = vmatpush.msra.mxu0 0.0
      %644 = vmatpush.msra.mxu0 0.0
      %645 = vmatpush.msra.mxu0 0.0
      %646 = vmatpush.msra.mxu0 0.0
      %647 = vmatpush.msra.mxu0 0.0
      %648 = vmatpush.msra.mxu0 0.0
      %649 = vmatpush.msra.mxu0 0.0
      %650 = vmatpush.msra.mxu0 %v613
      %651 = vmatmul.f32.gmra.mxu0 %v607
      %v652 = vpop.f32.mrf.mxu0
      %v653 = vadd.f32 0.0, %v652
      %654 = vdwg.mxu0
      %v655 = vadd.f32 %v584, %v633
      %v656 = vadd.f32 %v585, %v653
      %657 = vst [vmem:[#allocation1] ss:$2 sm:$0xff] %v253
      %v658 = vld.sshfl [vmem:[#allocation1] sm:$0xff pattern:$0x75316420]
      %v659 = vld.sshfl [vmem:[#allocation1 + $0x8] sm:$0xff pattern:$0x75316420]
      %662 = vrot.lane.b32.xlu0 %v658, 112
      %v663 = vpop.permute.xlu0 %662
      %664 = vrot.lane.b32.xlu0 %v659, 112
      %v665 = vpop.permute.xlu0 %664
      %vm666 = vcmp.lt.s32.totalorder %v255, 112
      %v667 = vsel %vm666, %v663, %v665
      %v668 = vsel %vm666, %v665, %v663
      %669 = vst [vmem:[#allocation1] ss:$2 sm:$0xff] %v253
      %v670 = vld.sshfl [vmem:[#allocation1] sm:$0xff pattern:$0x75316420]
      %v671 = vld.sshfl [vmem:[#allocation1 + $0x8] sm:$0xff pattern:$0x75316420]
      %v674 = vsel %vm261, %v667, %v670
      %v675 = vsel %vm262, %v668, %v671
      %676 = vrot.lane.b32.xlu0 %v674, 1
      %v677 = vpop.permute.xlu0 %676
      %678 = vrot.lane.b32.xlu0 %v675, 1
      %v679 = vpop.permute.xlu0 %678
      %v680 = vsel %vm291, %v677, %v679
      %v681 = vsel %vm291, %v679, %v677
      %v682 = vsel %vm263, %v681, %v674
      %v683 = vsel %vm264, %v680, %v675
      %s684 = scalar_lea.vmem %s2, 48
      %v685 = vld [vmem:[%s684] sm:$0xff]
      %v687 = vsel %vm299, %v685, 0
      %v690 = vsel %vm303, %v682, 0
      %v693 = vsel %vm303, %v683, 0
      %695 = vmatpush.msra.mxu0 0.0
      %696 = vmatpush.msra.mxu0 0.0
      %697 = vmatpush.msra.mxu0 0.0
      %698 = vmatpush.msra.mxu0 0.0
      %699 = vmatpush.msra.mxu0 0.0
      %700 = vmatpush.msra.mxu0 0.0
      %701 = vmatpush.msra.mxu0 0.0
      %702 = vmatpush.msra.mxu0 0.0
      %703 = vmatpush.msra.mxu0 0.0
      %704 = vmatpush.msra.mxu0 0.0
      %705 = vmatpush.msra.mxu0 0.0
      %706 = vmatpush.msra.mxu0 0.0
      %707 = vmatpush.msra.mxu0 0.0
      %708 = vmatpush.msra.mxu0 0.0
      %709 = vmatpush.msra.mxu0 0.0
      %710 = vmatpush.msra.mxu0 %v690
      %711 = vmatmul.f32.gmra.mxu0 %v687
      %v712 = vpop.f32.mrf.mxu0
      %v713 = vadd.f32 0.0, %v712
      %714 = vdwg.mxu0
      %715 = vmatpush.msra.mxu0 0.0
      %716 = vmatpush.msra.mxu0 0.0
      %717 = vmatpush.msra.mxu0 0.0
      %718 = vmatpush.msra.mxu0 0.0
      %719 = vmatpush.msra.mxu0 0.0
      %720 = vmatpush.msra.mxu0 0.0
      %721 = vmatpush.msra.mxu0 0.0
      %722 = vmatpush.msra.mxu0 0.0
      %723 = vmatpush.msra.mxu0 0.0
      %724 = vmatpush.msra.mxu0 0.0
      %725 = vmatpush.msra.mxu0 0.0
      %726 = vmatpush.msra.mxu0 0.0
      %727 = vmatpush.msra.mxu0 0.0
      %728 = vmatpush.msra.mxu0 0.0
      %729 = vmatpush.msra.mxu0 0.0
      %730 = vmatpush.msra.mxu0 %v693
      %731 = vmatmul.f32.gmra.mxu0 %v687
      %v732 = vpop.f32.mrf.mxu0
      %v733 = vadd.f32 0.0, %v732
      %734 = vdwg.mxu0
      %v735 = vadd.f32 %v655, %v713
      %v736 = vadd.f32 %v656, %v733
      %s737 = scalar_lea.vmem %s2, 56
      %v738 = vld [vmem:[%s737] sm:$0xff]
      %v740 = vsel %vm299, %v738, 0
      %v743 = vsel %vm303, %v674, 0
      %v746 = vsel %vm303, %v675, 0
      %748 = vmatpush.msra.mxu0 0.0
      %749 = vmatpush.msra.mxu0 0.0
      %750 = vmatpush.msra.mxu0 0.0
      %751 = vmatpush.msra.mxu0 0.0
      %752 = vmatpush.msra.mxu0 0.0
      %753 = vmatpush.msra.mxu0 0.0
      %754 = vmatpush.msra.mxu0 0.0
      %755 = vmatpush.msra.mxu0 0.0
      %756 = vmatpush.msra.mxu0 0.0
      %757 = vmatpush.msra.mxu0 0.0
      %758 = vmatpush.msra.mxu0 0.0
      %759 = vmatpush.msra.mxu0 0.0
      %760 = vmatpush.msra.mxu0 0.0
      %761 = vmatpush.msra.mxu0 0.0
      %762 = vmatpush.msra.mxu0 0.0
      %763 = vmatpush.msra.mxu0 %v743
      %764 = vmatmul.f32.gmra.mxu0 %v740
      %v765 = vpop.f32.mrf.mxu0
      %v766 = vadd.f32 0.0, %v765
      %767 = vdwg.mxu0
      %768 = vmatpush.msra.mxu0 0.0
      %769 = vmatpush.msra.mxu0 0.0
      %770 = vmatpush.msra.mxu0 0.0
      %771 = vmatpush.msra.mxu0 0.0
      %772 = vmatpush.msra.mxu0 0.0
      %773 = vmatpush.msra.mxu0 0.0
      %774 = vmatpush.msra.mxu0 0.0
      %775 = vmatpush.msra.mxu0 0.0
      %776 = vmatpush.msra.mxu0 0.0
      %777 = vmatpush.msra.mxu0 0.0
      %778 = vmatpush.msra.mxu0 0.0
      %779 = vmatpush.msra.mxu0 0.0
      %780 = vmatpush.msra.mxu0 0.0
      %781 = vmatpush.msra.mxu0 0.0
      %782 = vmatpush.msra.mxu0 0.0
      %783 = vmatpush.msra.mxu0 %v746
      %784 = vmatmul.f32.gmra.mxu0 %v740
      %v785 = vpop.f32.mrf.mxu0
      %v786 = vadd.f32 0.0, %v785
      %787 = vdwg.mxu0
      %v788 = vadd.f32 %v735, %v766
      %v789 = vadd.f32 %v736, %v786
      %790 = vrot.lane.b32.xlu0 %v674, 127
      %v791 = vpop.permute.xlu0 %790
      %792 = vrot.lane.b32.xlu0 %v675, 127
      %v793 = vpop.permute.xlu0 %792
      %v794 = vsel %vm403, %v791, %v793
      %v795 = vsel %vm403, %v793, %v791
      %v796 = vsel %vm265, %v794, %v674
      %v797 = vsel %vm266, %v795, %v675
      %s798 = scalar_lea.vmem %s2, 64
      %v799 = vld [vmem:[%s798] sm:$0xff]
      %v801 = vsel %vm299, %v799, 0
      %v804 = vsel %vm303, %v796, 0
      %v807 = vsel %vm303, %v797, 0
      %809 = vmatpush.msra.mxu0 0.0
      %810 = vmatpush.msra.mxu0 0.0
      %811 = vmatpush.msra.mxu0 0.0
      %812 = vmatpush.msra.mxu0 0.0
      %813 = vmatpush.msra.mxu0 0.0
      %814 = vmatpush.msra.mxu0 0.0
      %815 = vmatpush.msra.mxu0 0.0
      %816 = vmatpush.msra.mxu0 0.0
      %817 = vmatpush.msra.mxu0 0.0
      %818 = vmatpush.msra.mxu0 0.0
      %819 = vmatpush.msra.mxu0 0.0
      %820 = vmatpush.msra.mxu0 0.0
      %821 = vmatpush.msra.mxu0 0.0
      %822 = vmatpush.msra.mxu0 0.0
      %823 = vmatpush.msra.mxu0 0.0
      %824 = vmatpush.msra.mxu0 %v804
      %825 = vmatmul.f32.gmra.mxu0 %v801
      %v826 = vpop.f32.mrf.mxu0
      %v827 = vadd.f32 0.0, %v826
      %828 = vdwg.mxu0
      %829 = vmatpush.msra.mxu0 0.0
      %830 = vmatpush.msra.mxu0 0.0
      %831 = vmatpush.msra.mxu0 0.0
      %832 = vmatpush.msra.mxu0 0.0
      %833 = vmatpush.msra.mxu0 0.0
      %834 = vmatpush.msra.mxu0 0.0
      %835 = vmatpush.msra.mxu0 0.0
      %836 = vmatpush.msra.mxu0 0.0
      %837 = vmatpush.msra.mxu0 0.0
      %838 = vmatpush.msra.mxu0 0.0
      %839 = vmatpush.msra.mxu0 0.0
      %840 = vmatpush.msra.mxu0 0.0
      %841 = vmatpush.msra.mxu0 0.0
      %842 = vmatpush.msra.mxu0 0.0
      %843 = vmatpush.msra.mxu0 0.0
      %844 = vmatpush.msra.mxu0 %v807
      %845 = vmatmul.f32.gmra.mxu0 %v801
      %v846 = vpop.f32.mrf.mxu0
      %v847 = vadd.f32 0.0, %v846
      %848 = vdwg.mxu0
      %v849 = vadd.f32 %v788, %v827
      %v850 = vadd.f32 %v789, %v847
      %v851 = vld [vmem:[%s3] sm:$0xff]
      %853 = vset.pattern.permute.xlu0 0
      %854 = vperm.xlu0 %853, %v851
      %v855 = vpop.permute.xlu0 %854
      %v857 = vadd.f32 %v849, %v855
      %v858 = vadd.f32 %v850, %v855
      %v859 = vmax.f32 %v857, 0.0
      %v860 = vmax.f32 %v858, 0.0
      %861 = vrot.lane.b32.xlu0 %v859, 16
      %v862 = vpop.permute.xlu0 %861
      %863 = vrot.lane.b32.xlu0 %v860, 16
      %v864 = vpop.permute.xlu0 %863
      %v865 = vsel %vm277, %v862, %v864
      %v866 = vsel %vm277, %v864, %v862
      %v867 = vsel %vm259, %v866, %v859
      %v868 = vsel %vm260, %v865, %v860
      %869 = vrot.lane.b32.xlu0 %v867, 1
      %v870 = vpop.permute.xlu0 %869
      %871 = vrot.lane.b32.xlu0 %v868, 1
      %v872 = vpop.permute.xlu0 %871
      %v873 = vsel %vm291, %v870, %v872
      %v874 = vsel %vm291, %v872, %v870
      %v875 = vsel %vm263, %v874, %v867
      %v876 = vsel %vm264, %v873, %v868
      %v877 = vld [vmem:[%s4] sm:$0xff]
      %s878 = scalar_lea.vmem %s4, 8
      %v879 = vld [vmem:[%s878] sm:$0xff]
      %vm880 = vcmask 64512
      %v882 = vsel %vm880, %v879, 0
      %884 = vmatpush.msra.mxu0 0.0
      %885 = vmatpush.msra.mxu0 0.0
      %886 = vmatpush.msra.mxu0 0.0
      %887 = vmatpush.msra.mxu0 0.0
      %888 = vmatpush.msra.mxu0 0.0
      %889 = vmatpush.msra.mxu0 0.0
      %890 = vmatpush.msra.mxu0 0.0
      %891 = vmatpush.msra.mxu0 0.0
      %892 = vmatpush.msra.mxu0 0.0
      %893 = vmatpush.msra.mxu0 0.0
      %894 = vmatpush.msra.mxu0 0.0
      %895 = vmatpush.msra.mxu0 0.0
      %896 = vmatpush.msra.mxu0 0.0
      %897 = vmatpush.msra.mxu0 0.0
      %898 = vmatpush.msra.mxu0 0.0
      %899 = vmatpush.msra.mxu0 %v867
      %900 = vmatmul.f32.gmra.mxu0 %v882
      %v901 = vpop.f32.mrf.mxu0
      %v902 = vadd.f32 0.0, %v901
      %903 = vdwg.mxu0
      %904 = vmatpush.msra.mxu0 0.0
      %905 = vmatpush.msra.mxu0 0.0
      %906 = vmatpush.msra.mxu0 0.0
      %907 = vmatpush.msra.mxu0 0.0
      %908 = vmatpush.msra.mxu0 0.0
      %909 = vmatpush.msra.mxu0 0.0
      %910 = vmatpush.msra.mxu0 0.0
      %911 = vmatpush.msra.mxu0 0.0
      %912 = vmatpush.msra.mxu0 0.0
      %913 = vmatpush.msra.mxu0 0.0
      %914 = vmatpush.msra.mxu0 0.0
      %915 = vmatpush.msra.mxu0 0.0
      %916 = vmatpush.msra.mxu0 0.0
      %917 = vmatpush.msra.mxu0 0.0
      %918 = vmatpush.msra.mxu0 0.0
      %919 = vmatpush.msra.mxu0 %v868
      %920 = vmatmul.f32.gmra.mxu0 %v882
      %v921 = vpop.f32.mrf.mxu0
      %v922 = vadd.f32 0.0, %v921
      %923 = vdwg.mxu0
      %v925 = vsel %vm880, %v877, 0
      %927 = vmatpush.msra.mxu0 0.0
      %928 = vmatpush.msra.mxu0 0.0
      %929 = vmatpush.msra.mxu0 0.0
      %930 = vmatpush.msra.mxu0 0.0
      %931 = vmatpush.msra.mxu0 0.0
      %932 = vmatpush.msra.mxu0 0.0
      %933 = vmatpush.msra.mxu0 0.0
      %934 = vmatpush.msra.mxu0 0.0
      %935 = vmatpush.msra.mxu0 0.0
      %936 = vmatpush.msra.mxu0 0.0
      %937 = vmatpush.msra.mxu0 0.0
      %938 = vmatpush.msra.mxu0 0.0
      %939 = vmatpush.msra.mxu0 0.0
      %940 = vmatpush.msra.mxu0 0.0
      %941 = vmatpush.msra.mxu0 0.0
      %942 = vmatpush.msra.mxu0 %v875
      %943 = vmatmul.f32.gmra.mxu0 %v925
      %v944 = vpop.f32.mrf.mxu0
      %v945 = vadd.f32 %v902, %v944
      %946 = vdwg.mxu0
      %947 = vmatpush.msra.mxu0 0.0
      %948 = vmatpush.msra.mxu0 0.0
      %949 = vmatpush.msra.mxu0 0.0
      %950 = vmatpush.msra.mxu0 0.0
      %951 = vmatpush.msra.mxu0 0.0
      %952 = vmatpush.msra.mxu0 0.0
      %953 = vmatpush.msra.mxu0 0.0
      %954 = vmatpush.msra.mxu0 0.0
      %955 = vmatpush.msra.mxu0 0.0
      %956 = vmatpush.msra.mxu0 0.0
      %957 = vmatpush.msra.mxu0 0.0
      %958 = vmatpush.msra.mxu0 0.0
      %959 = vmatpush.msra.mxu0 0.0
      %960 = vmatpush.msra.mxu0 0.0
      %961 = vmatpush.msra.mxu0 0.0
      %962 = vmatpush.msra.mxu0 %v876
      %963 = vmatmul.f32.gmra.mxu0 %v925
      %v964 = vpop.f32.mrf.mxu0
      %v965 = vadd.f32 %v922, %v964
      %966 = vdwg.mxu0
      %967 = vrot.lane.b32.xlu0 %v867, 127
      %v968 = vpop.permute.xlu0 %967
      %969 = vrot.lane.b32.xlu0 %v868, 127
      %v970 = vpop.permute.xlu0 %969
      %v971 = vsel %vm403, %v968, %v970
      %v972 = vsel %vm403, %v970, %v968
      %v973 = vsel %vm265, %v971, %v867
      %v974 = vsel %vm266, %v972, %v868
      %s975 = scalar_lea.vmem %s4, 16
      %v976 = vld [vmem:[%s975] sm:$0xff]
      %v978 = vsel %vm880, %v976, 0
      %980 = vmatpush.msra.mxu0 0.0
      %981 = vmatpush.msra.mxu0 0.0
      %982 = vmatpush.msra.mxu0 0.0
      %983 = vmatpush.msra.mxu0 0.0
      %984 = vmatpush.msra.mxu0 0.0
      %985 = vmatpush.msra.mxu0 0.0
      %986 = vmatpush.msra.mxu0 0.0
      %987 = vmatpush.msra.mxu0 0.0
      %988 = vmatpush.msra.mxu0 0.0
      %989 = vmatpush.msra.mxu0 0.0
      %990 = vmatpush.msra.mxu0 0.0
      %991 = vmatpush.msra.mxu0 0.0
      %992 = vmatpush.msra.mxu0 0.0
      %993 = vmatpush.msra.mxu0 0.0
      %994 = vmatpush.msra.mxu0 0.0
      %995 = vmatpush.msra.mxu0 %v973
      %996 = vmatmul.f32.gmra.mxu0 %v978
      %v997 = vpop.f32.mrf.mxu0
      %v998 = vadd.f32 0.0, %v997
      %999 = vdwg.mxu0
      %1000 = vmatpush.msra.mxu0 0.0
      %1001 = vmatpush.msra.mxu0 0.0
      %1002 = vmatpush.msra.mxu0 0.0
      %1003 = vmatpush.msra.mxu0 0.0
      %1004 = vmatpush.msra.mxu0 0.0
      %1005 = vmatpush.msra.mxu0 0.0
      %1006 = vmatpush.msra.mxu0 0.0
      %1007 = vmatpush.msra.mxu0 0.0
      %1008 = vmatpush.msra.mxu0 0.0
      %1009 = vmatpush.msra.mxu0 0.0
      %1010 = vmatpush.msra.mxu0 0.0
      %1011 = vmatpush.msra.mxu0 0.0
      %1012 = vmatpush.msra.mxu0 0.0
      %1013 = vmatpush.msra.mxu0 0.0
      %1014 = vmatpush.msra.mxu0 0.0
      %1015 = vmatpush.msra.mxu0 %v974
      %1016 = vmatmul.f32.gmra.mxu0 %v978
      %v1017 = vpop.f32.mrf.mxu0
      %v1018 = vadd.f32 0.0, %v1017
      %1019 = vdwg.mxu0
      %v1020 = vadd.f32 %v945, %v998
      %v1021 = vadd.f32 %v965, %v1018
      %1022 = vrot.lane.b32.xlu0 %v859, 1
      %v1023 = vpop.permute.xlu0 %1022
      %1024 = vrot.lane.b32.xlu0 %v860, 1
      %v1025 = vpop.permute.xlu0 %1024
      %v1026 = vsel %vm291, %v1023, %v1025
      %v1027 = vsel %vm291, %v1025, %v1023
      %v1028 = vsel %vm263, %v1027, %v859
      %v1029 = vsel %vm264, %v1026, %v860
      %s1030 = scalar_lea.vmem %s4, 24
      %v1031 = vld [vmem:[%s1030] sm:$0xff]
      %v1033 = vsel %vm880, %v1031, 0
      %1035 = vmatpush.msra.mxu0 0.0
      %1036 = vmatpush.msra.mxu0 0.0
      %1037 = vmatpush.msra.mxu0 0.0
      %1038 = vmatpush.msra.mxu0 0.0
      %1039 = vmatpush.msra.mxu0 0.0
      %1040 = vmatpush.msra.mxu0 0.0
      %1041 = vmatpush.msra.mxu0 0.0
      %1042 = vmatpush.msra.mxu0 0.0
      %1043 = vmatpush.msra.mxu0 0.0
      %1044 = vmatpush.msra.mxu0 0.0
      %1045 = vmatpush.msra.mxu0 0.0
      %1046 = vmatpush.msra.mxu0 0.0
      %1047 = vmatpush.msra.mxu0 0.0
      %1048 = vmatpush.msra.mxu0 0.0
      %1049 = vmatpush.msra.mxu0 0.0
      %1050 = vmatpush.msra.mxu0 %v1028
      %1051 = vmatmul.f32.gmra.mxu0 %v1033
      %v1052 = vpop.f32.mrf.mxu0
      %v1053 = vadd.f32 0.0, %v1052
      %1054 = vdwg.mxu0
      %1055 = vmatpush.msra.mxu0 0.0
      %1056 = vmatpush.msra.mxu0 0.0
      %1057 = vmatpush.msra.mxu0 0.0
      %1058 = vmatpush.msra.mxu0 0.0
      %1059 = vmatpush.msra.mxu0 0.0
      %1060 = vmatpush.msra.mxu0 0.0
      %1061 = vmatpush.msra.mxu0 0.0
      %1062 = vmatpush.msra.mxu0 0.0
      %1063 = vmatpush.msra.mxu0 0.0
      %1064 = vmatpush.msra.mxu0 0.0
      %1065 = vmatpush.msra.mxu0 0.0
      %1066 = vmatpush.msra.mxu0 0.0
      %1067 = vmatpush.msra.mxu0 0.0
      %1068 = vmatpush.msra.mxu0 0.0
      %1069 = vmatpush.msra.mxu0 0.0
      %1070 = vmatpush.msra.mxu0 %v1029
      %1071 = vmatmul.f32.gmra.mxu0 %v1033
      %v1072 = vpop.f32.mrf.mxu0
      %v1073 = vadd.f32 0.0, %v1072
      %1074 = vdwg.mxu0
      %v1075 = vadd.f32 %v1020, %v1053
      %v1076 = vadd.f32 %v1021, %v1073
      %s1077 = scalar_lea.vmem %s4, 32
      %v1078 = vld [vmem:[%s1077] sm:$0xff]
      %v1080 = vsel %vm880, %v1078, 0
      %1082 = vmatpush.msra.mxu0 0.0
      %1083 = vmatpush.msra.mxu0 0.0
      %1084 = vmatpush.msra.mxu0 0.0
      %1085 = vmatpush.msra.mxu0 0.0
      %1086 = vmatpush.msra.mxu0 0.0
      %1087 = vmatpush.msra.mxu0 0.0
      %1088 = vmatpush.msra.mxu0 0.0
      %1089 = vmatpush.msra.mxu0 0.0
      %1090 = vmatpush.msra.mxu0 0.0
      %1091 = vmatpush.msra.mxu0 0.0
      %1092 = vmatpush.msra.mxu0 0.0
      %1093 = vmatpush.msra.mxu0 0.0
      %1094 = vmatpush.msra.mxu0 0.0
      %1095 = vmatpush.msra.mxu0 0.0
      %1096 = vmatpush.msra.mxu0 0.0
      %1097 = vmatpush.msra.mxu0 %v859
      %1098 = vmatmul.f32.gmra.mxu0 %v1080
      %v1099 = vpop.f32.mrf.mxu0
      %v1100 = vadd.f32 0.0, %v1099
      %1101 = vdwg.mxu0
      %1102 = vmatpush.msra.mxu0 0.0
      %1103 = vmatpush.msra.mxu0 0.0
      %1104 = vmatpush.msra.mxu0 0.0
      %1105 = vmatpush.msra.mxu0 0.0
      %1106 = vmatpush.msra.mxu0 0.0
      %1107 = vmatpush.msra.mxu0 0.0
      %1108 = vmatpush.msra.mxu0 0.0
      %1109 = vmatpush.msra.mxu0 0.0
      %1110 = vmatpush.msra.mxu0 0.0
      %1111 = vmatpush.msra.mxu0 0.0
      %1112 = vmatpush.msra.mxu0 0.0
      %1113 = vmatpush.msra.mxu0 0.0
      %1114 = vmatpush.msra.mxu0 0.0
      %1115 = vmatpush.msra.mxu0 0.0
      %1116 = vmatpush.msra.mxu0 0.0
      %1117 = vmatpush.msra.mxu0 %v860
      %1118 = vmatmul.f32.gmra.mxu0 %v1080
      %v1119 = vpop.f32.mrf.mxu0
      %v1120 = vadd.f32 0.0, %v1119
      %1121 = vdwg.mxu0
      %v1122 = vadd.f32 %v1075, %v1100
      %v1123 = vadd.f32 %v1076, %v1120
      %1124 = vrot.lane.b32.xlu0 %v859, 127
      %v1125 = vpop.permute.xlu0 %1124
      %1126 = vrot.lane.b32.xlu0 %v860, 127
      %v1127 = vpop.permute.xlu0 %1126
      %v1128 = vsel %vm403, %v1125, %v1127
      %v1129 = vsel %vm403, %v1127, %v1125
      %v1130 = vsel %vm265, %v1128, %v859
      %v1131 = vsel %vm266, %v1129, %v860
      %s1132 = scalar_lea.vmem %s4, 40
      %v1133 = vld [vmem:[%s1132] sm:$0xff]
      %v1135 = vsel %vm880, %v1133, 0
      %1137 = vmatpush.msra.mxu0 0.0
      %1138 = vmatpush.msra.mxu0 0.0
      %1139 = vmatpush.msra.mxu0 0.0
      %1140 = vmatpush.msra.mxu0 0.0
      %1141 = vmatpush.msra.mxu0 0.0
      %1142 = vmatpush.msra.mxu0 0.0
      %1143 = vmatpush.msra.mxu0 0.0
      %1144 = vmatpush.msra.mxu0 0.0
      %1145 = vmatpush.msra.mxu0 0.0
      %1146 = vmatpush.msra.mxu0 0.0
      %1147 = vmatpush.msra.mxu0 0.0
      %1148 = vmatpush.msra.mxu0 0.0
      %1149 = vmatpush.msra.mxu0 0.0
      %1150 = vmatpush.msra.mxu0 0.0
      %1151 = vmatpush.msra.mxu0 0.0
      %1152 = vmatpush.msra.mxu0 %v1130
      %1153 = vmatmul.f32.gmra.mxu0 %v1135
      %v1154 = vpop.f32.mrf.mxu0
      %v1155 = vadd.f32 0.0, %v1154
      %1156 = vdwg.mxu0
      %1157 = vmatpush.msra.mxu0 0.0
      %1158 = vmatpush.msra.mxu0 0.0
      %1159 = vmatpush.msra.mxu0 0.0
      %1160 = vmatpush.msra.mxu0 0.0
      %1161 = vmatpush.msra.mxu0 0.0
      %1162 = vmatpush.msra.mxu0 0.0
      %1163 = vmatpush.msra.mxu0 0.0
      %1164 = vmatpush.msra.mxu0 0.0
      %1165 = vmatpush.msra.mxu0 0.0
      %1166 = vmatpush.msra.mxu0 0.0
      %1167 = vmatpush.msra.mxu0 0.0
      %1168 = vmatpush.msra.mxu0 0.0
      %1169 = vmatpush.msra.mxu0 0.0
      %1170 = vmatpush.msra.mxu0 0.0
      %1171 = vmatpush.msra.mxu0 0.0
      %1172 = vmatpush.msra.mxu0 %v1131
      %1173 = vmatmul.f32.gmra.mxu0 %v1135
      %v1174 = vpop.f32.mrf.mxu0
      %v1175 = vadd.f32 0.0, %v1174
      %1176 = vdwg.mxu0
      %v1177 = vadd.f32 %v1122, %v1155
      %v1178 = vadd.f32 %v1123, %v1175
      %1179 = vrot.lane.b32.xlu0 %v859, 112
      %v1180 = vpop.permute.xlu0 %1179
      %1181 = vrot.lane.b32.xlu0 %v860, 112
      %v1182 = vpop.permute.xlu0 %1181
      %v1183 = vsel %vm666, %v1180, %v1182
      %v1184 = vsel %vm666, %v1182, %v1180
      %v1185 = vsel %vm261, %v1183, %v859
      %v1186 = vsel %vm262, %v1184, %v860
      %1187 = vrot.lane.b32.xlu0 %v1185, 1
      %v1188 = vpop.permute.xlu0 %1187
      %1189 = vrot.lane.b32.xlu0 %v1186, 1
      %v1190 = vpop.permute.xlu0 %1189
      %v1191 = vsel %vm291, %v1188, %v1190
      %v1192 = vsel %vm291, %v1190, %v1188
      %v1193 = vsel %vm263, %v1192, %v1185
      %v1194 = vsel %vm264, %v1191, %v1186
      %s1195 = scalar_lea.vmem %s4, 48
      %v1196 = vld [vmem:[%s1195] sm:$0xff]
      %v1198 = vsel %vm880, %v1196, 0
      %1200 = vmatpush.msra.mxu0 0.0
      %1201 = vmatpush.msra.mxu0 0.0
      %1202 = vmatpush.msra.mxu0 0.0
      %1203 = vmatpush.msra.mxu0 0.0
      %1204 = vmatpush.msra.mxu0 0.0
      %1205 = vmatpush.msra.mxu0 0.0
      %1206 = vmatpush.msra.mxu0 0.0
      %1207 = vmatpush.msra.mxu0 0.0
      %1208 = vmatpush.msra.mxu0 0.0
      %1209 = vmatpush.msra.mxu0 0.0
      %1210 = vmatpush.msra.mxu0 0.0
      %1211 = vmatpush.msra.mxu0 0.0
      %1212 = vmatpush.msra.mxu0 0.0
      %1213 = vmatpush.msra.mxu0 0.0
      %1214 = vmatpush.msra.mxu0 0.0
      %1215 = vmatpush.msra.mxu0 %v1193
      %1216 = vmatmul.f32.gmra.mxu0 %v1198
      %v1217 = vpop.f32.mrf.mxu0
      %v1218 = vadd.f32 0.0, %v1217
      %1219 = vdwg.mxu0
      %1220 = vmatpush.msra.mxu0 0.0
      %1221 = vmatpush.msra.mxu0 0.0
      %1222 = vmatpush.msra.mxu0 0.0
      %1223 = vmatpush.msra.mxu0 0.0
      %1224 = vmatpush.msra.mxu0 0.0
      %1225 = vmatpush.msra.mxu0 0.0
      %1226 = vmatpush.msra.mxu0 0.0
      %1227 = vmatpush.msra.mxu0 0.0
      %1228 = vmatpush.msra.mxu0 0.0
      %1229 = vmatpush.msra.mxu0 0.0
      %1230 = vmatpush.msra.mxu0 0.0
      %1231 = vmatpush.msra.mxu0 0.0
      %1232 = vmatpush.msra.mxu0 0.0
      %1233 = vmatpush.msra.mxu0 0.0
      %1234 = vmatpush.msra.mxu0 0.0
      %1235 = vmatpush.msra.mxu0 %v1194
      %1236 = vmatmul.f32.gmra.mxu0 %v1198
      %v1237 = vpop.f32.mrf.mxu0
      %v1238 = vadd.f32 0.0, %v1237
      %1239 = vdwg.mxu0
      %v1240 = vadd.f32 %v1177, %v1218
      %v1241 = vadd.f32 %v1178, %v1238
      %s1242 = scalar_lea.vmem %s4, 56
      %v1243 = vld [vmem:[%s1242] sm:$0xff]
      %v1245 = vsel %vm880, %v1243, 0
      %1247 = vmatpush.msra.mxu0 0.0
      %1248 = vmatpush.msra.mxu0 0.0
      %1249 = vmatpush.msra.mxu0 0.0
      %1250 = vmatpush.msra.mxu0 0.0
      %1251 = vmatpush.msra.mxu0 0.0
      %1252 = vmatpush.msra.mxu0 0.0
      %1253 = vmatpush.msra.mxu0 0.0
      %1254 = vmatpush.msra.mxu0 0.0
      %1255 = vmatpush.msra.mxu0 0.0
      %1256 = vmatpush.msra.mxu0 0.0
      %1257 = vmatpush.msra.mxu0 0.0
      %1258 = vmatpush.msra.mxu0 0.0
      %1259 = vmatpush.msra.mxu0 0.0
      %1260 = vmatpush.msra.mxu0 0.0
      %1261 = vmatpush.msra.mxu0 0.0
      %1262 = vmatpush.msra.mxu0 %v1185
      %1263 = vmatmul.f32.gmra.mxu0 %v1245
      %v1264 = vpop.f32.mrf.mxu0
      %v1265 = vadd.f32 0.0, %v1264
      %1266 = vdwg.mxu0
      %1267 = vmatpush.msra.mxu0 0.0
      %1268 = vmatpush.msra.mxu0 0.0
      %1269 = vmatpush.msra.mxu0 0.0
      %1270 = vmatpush.msra.mxu0 0.0
      %1271 = vmatpush.msra.mxu0 0.0
      %1272 = vmatpush.msra.mxu0 0.0
      %1273 = vmatpush.msra.mxu0 0.0
      %1274 = vmatpush.msra.mxu0 0.0
      %1275 = vmatpush.msra.mxu0 0.0
      %1276 = vmatpush.msra.mxu0 0.0
      %1277 = vmatpush.msra.mxu0 0.0
      %1278 = vmatpush.msra.mxu0 0.0
      %1279 = vmatpush.msra.mxu0 0.0
      %1280 = vmatpush.msra.mxu0 0.0
      %1281 = vmatpush.msra.mxu0 0.0
      %1282 = vmatpush.msra.mxu0 %v1186
      %1283 = vmatmul.f32.gmra.mxu0 %v1245
      %v1284 = vpop.f32.mrf.mxu0
      %v1285 = vadd.f32 0.0, %v1284
      %1286 = vdwg.mxu0
      %v1287 = vadd.f32 %v1240, %v1265
      %v1288 = vadd.f32 %v1241, %v1285
      %1289 = vrot.lane.b32.xlu0 %v1185, 127
      %v1290 = vpop.permute.xlu0 %1289
      %1291 = vrot.lane.b32.xlu0 %v1186, 127
      %v1292 = vpop.permute.xlu0 %1291
      %v1293 = vsel %vm403, %v1290, %v1292
      %v1294 = vsel %vm403, %v1292, %v1290
      %v1295 = vsel %vm265, %v1293, %v1185
      %v1296 = vsel %vm266, %v1294, %v1186
      %s1297 = scalar_lea.vmem %s4, 64
      %v1298 = vld [vmem:[%s1297] sm:$0xff]
      %v1300 = vsel %vm880, %v1298, 0
      %1302 = vmatpush.msra.mxu0 0.0
      %1303 = vmatpush.msra.mxu0 0.0
      %1304 = vmatpush.msra.mxu0 0.0
      %1305 = vmatpush.msra.mxu0 0.0
      %1306 = vmatpush.msra.mxu0 0.0
      %1307 = vmatpush.msra.mxu0 0.0
      %1308 = vmatpush.msra.mxu0 0.0
      %1309 = vmatpush.msra.mxu0 0.0
      %1310 = vmatpush.msra.mxu0 0.0
      %1311 = vmatpush.msra.mxu0 0.0
      %1312 = vmatpush.msra.mxu0 0.0
      %1313 = vmatpush.msra.mxu0 0.0
      %1314 = vmatpush.msra.mxu0 0.0
      %1315 = vmatpush.msra.mxu0 0.0
      %1316 = vmatpush.msra.mxu0 0.0
      %1317 = vmatpush.msra.mxu0 %v1295
      %1318 = vmatmul.f32.gmra.mxu0 %v1300
      %v1319 = vpop.f32.mrf.mxu0
      %v1320 = vadd.f32 0.0, %v1319
      %1321 = vdwg.mxu0
      %1322 = vmatpush.msra.mxu0 0.0
      %1323 = vmatpush.msra.mxu0 0.0
      %1324 = vmatpush.msra.mxu0 0.0
      %1325 = vmatpush.msra.mxu0 0.0
      %1326 = vmatpush.msra.mxu0 0.0
      %1327 = vmatpush.msra.mxu0 0.0
      %1328 = vmatpush.msra.mxu0 0.0
      %1329 = vmatpush.msra.mxu0 0.0
      %1330 = vmatpush.msra.mxu0 0.0
      %1331 = vmatpush.msra.mxu0 0.0
      %1332 = vmatpush.msra.mxu0 0.0
      %1333 = vmatpush.msra.mxu0 0.0
      %1334 = vmatpush.msra.mxu0 0.0
      %1335 = vmatpush.msra.mxu0 0.0
      %1336 = vmatpush.msra.mxu0 0.0
      %1337 = vmatpush.msra.mxu0 %v1296
      %1338 = vmatmul.f32.gmra.mxu0 %v1300
      %v1339 = vpop.f32.mrf.mxu0
      %v1340 = vadd.f32 0.0, %v1339
      %1341 = vdwg.mxu0
      %v1342 = vadd.f32 %v1287, %v1320
      %v1343 = vadd.f32 %v1288, %v1340
      %v1344 = vld [vmem:[%s5] sm:$0xff]
      %1346 = vset.pattern.permute.xlu0 0
      %1347 = vperm.xlu0 %1346, %v1344
      %v1348 = vpop.permute.xlu0 %1347
      %v1350 = vadd.f32 %v1342, %v1348
      %v1351 = vadd.f32 %v1343, %v1348
      %v1352 = vmax.f32 %v1350, 0.0
      %v1353 = vmax.f32 %v1351, 0.0
      %1354 = vst [vmem:[%s251] sm:$0xff] %v1352
      %1355 = vst [vmem:[%s251 + $0x8] sm:$0xff] %v1353
      %p1356 = scmp.lt.s32.totalorder %s17, 1
      %s1357 = scalar_select %p1356, %s17, 1
      %s1358 = smul.addr %s1357, 2
      %s1359 = smul.addr %s1358, 8
      %s1360 = scalar_lea.vmem %s6, %s1359
      // Predicated region
      $region45: #{conv_block_init.1} parent=43 // pred_check
        %p1361 = pneg %p166
      $region46: #{conv_block_init.1} parent=43 // pred_check_branch
        %1363 = sbr.rel (%p1361) target = $region48
      $region47: #{conv_block_init.1} parent=43 // pred_region
        _
      $region48: #{conv_block_init.1} parent=43 // pred_fallthru
        _
    $region44: #{conv_block_init.1} parent=5 // pred_fallthru
      _
    %p1364 = scmp.le.s32.totalorder 2, %s12
    // Predicated region
    $region49: #{conv_block_init.1} parent=5 // pred_check
      %p1365 = pneg %p1364
    $region50: #{conv_block_init.1} parent=5 // pred_check_branch
      %1367 = sbr.rel (%p1365) target = $region52
    $region51: #{conv_block_init.1} parent=5 // pred_region
      %s1368 = ssub.s32 %s12, 2
      // Predicated region
      $region53: #{conv_block_init.1} parent=51 // pred_check
        %p1369 = pneg %p172
      $region54: #{conv_block_init.1} parent=51 // pred_check_branch
        %1371 = sbr.rel (%p1369) target = $region56
      $region55: #{conv_block_init.1} parent=51 // pred_region
        %p1372 = scmp.lt.s32.totalorder %s18, 1
        %s1373 = scalar_select %p1372, %s18, 1
        %s1374 = smul.addr %s1373, 2
        %s1375 = smul.addr %s1374, 8
        %s1376 = scalar_lea.vmem %s6, %s1375
      $region56: #{conv_block_init.1} parent=51 // pred_fallthru
        _
    $region52: #{conv_block_init.1} parent=5 // pred_fallthru
      _
  $region6: #{conv_block_init.1} parent=0 // loop_footer
    %s16 = sadd.s32 1, %s12
  $region7: #{conv_block_init.1} parent=0 // loop_footer_branch
    %11 = sbr.rel target = $region3
  $region8: #{conv_block_init.1} parent=0 // loop_exit
    _

</llo_original>
